<compile_context>
chip_gen: v6e
topology: v6e:2x2x1
jax: 0.10.0
libtpu: 0.0.40
codegen_flags: <defaults>
</compile_context>

<pallas_src>
import jax
import jax.numpy as jnp
from jax.experimental import pallas as pl
from jax.experimental.pallas import tpu as pltpu

# ---------------------------------------------------------------------------
# Model dimensions (small, consistent with module defaults)
# ---------------------------------------------------------------------------
N_POINTS = 128          # points per cloud
D_XYZ = 3               # coordinates
PC_HIDDEN1 = 64
PC_HIDDEN2 = 128
PC_LATENT = 64          # pc_latent_size
D_GRASP = 7             # grasp pose vector (translation + quaternion)
FEAT_RES = 16           # feature_resolution of ConditionalGraspPoseEncoder
NET_HIDDEN = 32         # hidden width of conditional residual block
GRASP_LATENT = 4        # grasp_latent_size


# ---------------------------------------------------------------------------
# Fused kernel: per grid step b = one point cloud + its R grasps
# ---------------------------------------------------------------------------
def _fused_kernel(xyz_ref, h_ref,
                  pc_w1_ref, pc_b1_ref, pc_w2_ref, pc_b2_ref, pc_w3_ref, pc_b3_ref,
                  g_w_in_ref, g_b_in_ref, g_w_cc_ref, g_b_cc_ref,
                  g_w_f1_ref, g_b_f1_ref, g_w_f2_ref, g_b_f2_ref,
                  g_w_out_ref, g_b_out_ref,
                  zg_ref, zpc_ref):
    # ---------------- point-cloud encoder (PointNet-style) ----------------
    x = xyz_ref[0]                      # [N, 3]
    w1 = pc_w1_ref[...]                 # [3, 64]
    # K=3 contraction as three VPU broadcast-FMAs (avoid a K=3 MXU matmul).
    h1 = (x[:, 0:1] * w1[0:1, :]
          + x[:, 1:2] * w1[1:2, :]
          + x[:, 2:3] * w1[2:3, :]
          + pc_b1_ref[...])
    h1 = jnp.maximum(h1, 0.0)           # [N, 64]
    h2 = jnp.maximum(
        jnp.dot(h1, pc_w2_ref[...], preferred_element_type=jnp.float32)
        + pc_b2_ref[...], 0.0)          # [N, 128]
    g = jnp.max(h2, axis=0, keepdims=True)               # [1, 128] global max pool
    z_pc = (jnp.dot(g, pc_w3_ref[...], preferred_element_type=jnp.float32)
            + pc_b3_ref[...])                            # [1, PC_LATENT]

    # ---------------- conditional grasp encoder (batched over R grasps) ----
    hh = h_ref[0]                                        # [R, D_GRASP]
    # in_layer
    x0 = (jnp.dot(hh, g_w_in_ref[...], preferred_element_type=jnp.float32)
          + g_b_in_ref[...])                             # [R, FEAT_RES]
    # FiLM conditioning from z_pc (scale|shift packed into one matmul)
    ss = (jnp.dot(z_pc, g_w_cc_ref[...], preferred_element_type=jnp.float32)
          + g_b_cc_ref[...])                             # [1, 2*FEAT_RES]
    scale = ss[:, :FEAT_RES]
    shift = ss[:, FEAT_RES:]
    x1 = x0 * (1.0 + scale) + shift                      # broadcasts over R rows
    # residual MLP block (FEAT_RES -> NET_HIDDEN -> FEAT_RES)
    mid = jnp.maximum(
        jnp.dot(x1, g_w_f1_ref[...], preferred_element_type=jnp.float32)
        + g_b_f1_ref[...], 0.0)                          # [R, NET_HIDDEN]
    y = x0 + (jnp.dot(mid, g_w_f2_ref[...], preferred_element_type=jnp.float32)
              + g_b_f2_ref[...])                         # [R, FEAT_RES]
    # out_layer
    out = (jnp.dot(y, g_w_out_ref[...], preferred_element_type=jnp.float32)
           + g_b_out_ref[...])                           # [R, GRASP_LATENT]

    # dense whole-block stores (one per grid step, not per grasp row)
    zg_ref[0] = out
    zpc_ref[0] = jnp.broadcast_to(z_pc, (hh.shape[0], PC_LATENT))


def _fused_call(xyz, h_grp, p):
    b_pc, r, _ = h_grp.shape
    full = lambda a: pl.BlockSpec(a.shape, lambda b, _a=a: (0,) * _a.ndim)
    param_order = ("pc_w1", "pc_b1", "pc_w2", "pc_b2", "pc_w3", "pc_b3",
                   "g_w_in", "g_b_in", "g_w_cc", "g_b_cc",
                   "g_w_f1", "g_b_f1", "g_w_f2", "g_b_f2",
                   "g_w_out", "g_b_out")
    return pl.pallas_call(
        _fused_kernel,
        out_shape=(jax.ShapeDtypeStruct((b_pc, r, GRASP_LATENT), jnp.float32),
                   jax.ShapeDtypeStruct((b_pc, r, PC_LATENT), jnp.float32)),
        grid=(b_pc,),
        in_specs=[
            pl.BlockSpec((1, N_POINTS, D_XYZ), lambda b: (b, 0, 0)),
            pl.BlockSpec((1, r, D_GRASP), lambda b: (b, 0, 0)),
        ] + [full(p[name]) for name in param_order],
        out_specs=(pl.BlockSpec((1, r, GRASP_LATENT), lambda b: (b, 0, 0)),
                   pl.BlockSpec((1, r, PC_LATENT), lambda b: (b, 0, 0))),
        compiler_params=pltpu.CompilerParams(
            dimension_semantics=("parallel",)),
    )(xyz, h_grp, *[p[name] for name in param_order])


# ---------------------------------------------------------------------------
# Full forward:  PcConditionedGraspEncoder.forward(xyz, h)
# ---------------------------------------------------------------------------
@jax.jit
def pc_conditioned_grasp_encoder_forward(xyz, h, params):
    batch_size_h = h.shape[0]
    batch_size_pc = xyz.shape[0]
    assert batch_size_h % batch_size_pc == 0, (
        "h batch must be a multiple of xyz batch (repeat_interleave semantics)")
    pc_repeats = batch_size_h // batch_size_pc

    # group grasps by their point cloud: row i pairs with cloud i // pc_repeats,
    # which matches torch's repeat_interleave(pc_repeats, dim=0) pairing.
    h_grp = h.reshape(batch_size_pc, pc_repeats, D_GRASP)

    z_grasp, z_pc = _fused_call(xyz, h_grp, params)
    z_grasp = z_grasp.reshape(batch_size_h, 1, GRASP_LATENT)   # [B_h, 1, L]
    z_pc = z_pc.reshape(batch_size_h, 1, PC_LATENT)            # repeated latent
    return z_grasp, z_pc


# ---------------------------------------------------------------------------
# Deterministic parameter init
# ---------------------------------------------------------------------------
def init_params(key):
    ks = jax.random.split(key, 16)
    n = lambda k, shape, s=0.1: (s * jax.random.normal(k, shape)).astype(jnp.float32)
    return {
        # pc encoder
        "pc_w1": n(ks[0], (D_XYZ, PC_HIDDEN1)),
        "pc_b1": n(ks[1], (1, PC_HIDDEN1)),
        "pc_w2": n(ks[2], (PC_HIDDEN1, PC_HIDDEN2)),
        "pc_b2": n(ks[3], (1, PC_HIDDEN2)),
        "pc_w3": n(ks[4], (PC_HIDDEN2, PC_LATENT)),
        "pc_b3": n(ks[5], (1, PC_LATENT)),
        # grasp encoder
        "g_w_in": n(ks[6], (D_GRASP, FEAT_RES)),
        "g_b_in": n(ks[7], (1, FEAT_RES)),
        # FiLM scale|shift packed into a single [PC_LATENT, 2*FEAT_RES] slab
        "g_w_cc": n(ks[8], (PC_LATENT, 2 * FEAT_RES)),
        "g_b_cc": n(ks[9], (1, 2 * FEAT_RES)),
        "g_w_f1": n(ks[12], (FEAT_RES, NET_HIDDEN)),
        "g_b_f1": n(ks[13], (1, NET_HIDDEN)),
        "g_w_f2": n(ks[14], (NET_HIDDEN, FEAT_RES)),
        "g_b_f2": n(ks[15], (1, FEAT_RES)),
        "g_w_out": n(jax.random.fold_in(key, 100), (FEAT_RES, GRASP_LATENT)),
        "g_b_out": n(jax.random.fold_in(key, 101), (1, GRASP_LATENT)),
    }


if __name__ == "__main__":
    key = jax.random.PRNGKey(0)
    k_xyz, k_h, k_params = jax.random.split(key, 3)

    B_PC = 2
    B_H = 4   # pc_repeats = 2

    xyz = jax.random.normal(k_xyz, (B_PC, N_POINTS, D_XYZ), dtype=jnp.float32)
    h = jax.random.normal(k_h, (B_H, D_GRASP), dtype=jnp.float32)
    params = init_params(k_params)

    z_grasp, z_pc = pc_conditioned_grasp_encoder_forward(xyz, h, params)
    jax.block_until_ready((z_grasp, z_pc))

    assert z_grasp.shape == (B_H, 1, GRASP_LATENT), z_grasp.shape
    assert z_pc.shape == (B_H, 1, PC_LATENT), z_pc.shape
    # repeated z_pc rows of the same cloud must be identical (repeat_interleave)
    assert bool(jnp.allclose(z_pc[0], z_pc[1])) and bool(jnp.allclose(z_pc[2], z_pc[3]))
    print("KERNEL_OK")
</pallas_src>

<mosaic_0001>
module attributes {stable_mosaic.version = 11 : i64} {
  func.func @_fused_kernel(%arg0: i32, %arg1: memref<1x128x3xf32, #tpu.memory_space<vmem>>, %arg2: memref<1x2x7xf32, #tpu.memory_space<vmem>>, %arg3: memref<3x64xf32, #tpu.memory_space<vmem>>, %arg4: memref<1x64xf32, #tpu.memory_space<vmem>>, %arg5: memref<64x128xf32, #tpu.memory_space<vmem>>, %arg6: memref<1x128xf32, #tpu.memory_space<vmem>>, %arg7: memref<128x64xf32, #tpu.memory_space<vmem>>, %arg8: memref<1x64xf32, #tpu.memory_space<vmem>>, %arg9: memref<7x16xf32, #tpu.memory_space<vmem>>, %arg10: memref<1x16xf32, #tpu.memory_space<vmem>>, %arg11: memref<64x32xf32, #tpu.memory_space<vmem>>, %arg12: memref<1x32xf32, #tpu.memory_space<vmem>>, %arg13: memref<16x32xf32, #tpu.memory_space<vmem>>, %arg14: memref<1x32xf32, #tpu.memory_space<vmem>>, %arg15: memref<32x16xf32, #tpu.memory_space<vmem>>, %arg16: memref<1x16xf32, #tpu.memory_space<vmem>>, %arg17: memref<16x4xf32, #tpu.memory_space<vmem>>, %arg18: memref<1x4xf32, #tpu.memory_space<vmem>>, %arg19: memref<1x2x4xf32, #tpu.memory_space<vmem>>, %arg20: memref<1x2x64xf32, #tpu.memory_space<vmem>>) attributes {dimension_semantics = [#tpu.dimension_semantics<parallel>], iteration_bounds = array<i64: 2>, scalar_prefetch = 0 : i64, scratch_operands = 0 : i64, tpu.core_type = #tpu.core_type<tc>, window_params = [{transform_indices = @transform_0, window_bounds = array<i64: 1, 128, 3>}, {transform_indices = @transform_1, window_bounds = array<i64: 1, 2, 7>}, {pipeline_mode = #tpu.pipeline_mode<synchronous>, transform_indices = @transform_2, window_bounds = array<i64: 3, 64>}, {pipeline_mode = #tpu.pipeline_mode<synchronous>, transform_indices = @transform_3, window_bounds = array<i64: 1, 64>}, {pipeline_mode = #tpu.pipeline_mode<synchronous>, transform_indices = @transform_4, window_bounds = array<i64: 64, 128>}, {pipeline_mode = #tpu.pipeline_mode<synchronous>, transform_indices = @transform_5, window_bounds = array<i64: 1, 128>}, {pipeline_mode = #tpu.pipeline_mode<synchronous>, transform_indices = @transform_6, window_bounds = array<i64: 128, 64>}, {pipeline_mode = #tpu.pipeline_mode<synchronous>, transform_indices = @transform_7, window_bounds = array<i64: 1, 64>}, {pipeline_mode = #tpu.pipeline_mode<synchronous>, transform_indices = @transform_8, window_bounds = array<i64: 7, 16>}, {pipeline_mode = #tpu.pipeline_mode<synchronous>, transform_indices = @transform_9, window_bounds = array<i64: 1, 16>}, {pipeline_mode = #tpu.pipeline_mode<synchronous>, transform_indices = @transform_10, window_bounds = array<i64: 64, 32>}, {pipeline_mode = #tpu.pipeline_mode<synchronous>, transform_indices = @transform_11, window_bounds = array<i64: 1, 32>}, {pipeline_mode = #tpu.pipeline_mode<synchronous>, transform_indices = @transform_12, window_bounds = array<i64: 16, 32>}, {pipeline_mode = #tpu.pipeline_mode<synchronous>, transform_indices = @transform_13, window_bounds = array<i64: 1, 32>}, {pipeline_mode = #tpu.pipeline_mode<synchronous>, transform_indices = @transform_14, window_bounds = array<i64: 32, 16>}, {pipeline_mode = #tpu.pipeline_mode<synchronous>, transform_indices = @transform_15, window_bounds = array<i64: 1, 16>}, {pipeline_mode = #tpu.pipeline_mode<synchronous>, transform_indices = @transform_16, window_bounds = array<i64: 16, 4>}, {pipeline_mode = #tpu.pipeline_mode<synchronous>, transform_indices = @transform_17, window_bounds = array<i64: 1, 4>}, {transform_indices = @transform_18, window_bounds = array<i64: 1, 2, 4>}, {transform_indices = @transform_19, window_bounds = array<i64: 1, 2, 64>}]} {
    %c0 = arith.constant 0 : index
    %c0_0 = arith.constant 0 : index
    %c0_1 = arith.constant 0 : index
    %0 = vector.load %arg1[%c0, %c0_0, %c0_1] : memref<1x128x3xf32, #tpu.memory_space<vmem>>, vector<1x128x3xf32>
    %1 = vector.shape_cast %0 : vector<1x128x3xf32> to vector<128x3xf32>
    %c0_2 = arith.constant 0 : index
    %c0_3 = arith.constant 0 : index
    %2 = vector.load %arg3[%c0_2, %c0_3] : memref<3x64xf32, #tpu.memory_space<vmem>>, vector<3x64xf32>
    %3 = vector.extract_strided_slice %1 {offsets = [0, 0], sizes = [128, 1], strides = [1, 1]} : vector<128x3xf32> to vector<128x1xf32>
    %4 = vector.extract_strided_slice %2 {offsets = [0, 0], sizes = [1, 64], strides = [1, 1]} : vector<3x64xf32> to vector<1x64xf32>
    %5 = vector.broadcast %3 : vector<128x1xf32> to vector<128x64xf32>
    %6 = vector.broadcast %4 : vector<1x64xf32> to vector<128x64xf32>
    %7 = arith.mulf %5, %6 : vector<128x64xf32>
    %8 = vector.extract_strided_slice %1 {offsets = [0, 1], sizes = [128, 1], strides = [1, 1]} : vector<128x3xf32> to vector<128x1xf32>
    %9 = vector.extract_strided_slice %2 {offsets = [1, 0], sizes = [1, 64], strides = [1, 1]} : vector<3x64xf32> to vector<1x64xf32>
    %10 = vector.broadcast %8 : vector<128x1xf32> to vector<128x64xf32>
    %11 = vector.broadcast %9 : vector<1x64xf32> to vector<128x64xf32>
    %12 = arith.mulf %10, %11 : vector<128x64xf32>
    %13 = arith.addf %7, %12 : vector<128x64xf32>
    %14 = vector.extract_strided_slice %1 {offsets = [0, 2], sizes = [128, 1], strides = [1, 1]} : vector<128x3xf32> to vector<128x1xf32>
    %15 = vector.extract_strided_slice %2 {offsets = [2, 0], sizes = [1, 64], strides = [1, 1]} : vector<3x64xf32> to vector<1x64xf32>
    %16 = vector.broadcast %14 : vector<128x1xf32> to vector<128x64xf32>
    %17 = vector.broadcast %15 : vector<1x64xf32> to vector<128x64xf32>
    %18 = arith.mulf %16, %17 : vector<128x64xf32>
    %19 = arith.addf %13, %18 : vector<128x64xf32>
    %c0_4 = arith.constant 0 : index
    %c0_5 = arith.constant 0 : index
    %20 = vector.load %arg4[%c0_4, %c0_5] : memref<1x64xf32, #tpu.memory_space<vmem>>, vector<1x64xf32>
    %21 = vector.broadcast %20 : vector<1x64xf32> to vector<128x64xf32>
    %22 = arith.addf %19, %21 : vector<128x64xf32>
    %cst = arith.constant 0.000000e+00 : f32
    %23 = vector.broadcast %cst : f32 to vector<128x64xf32>
    %24 = arith.maximumf %22, %23 : vector<128x64xf32>
    %c0_6 = arith.constant 0 : index
    %c0_7 = arith.constant 0 : index
    %25 = vector.load %arg5[%c0_6, %c0_7] : memref<64x128xf32, #tpu.memory_space<vmem>>, vector<64x128xf32>
    %cst_8 = arith.constant dense<0.000000e+00> : vector<128x128xf32>
    %26 = tpu.matmul %24, %25, %cst_8 {dimension_numbers = #tpu.dot_dimension_numbers<[1], [0], [0], [1], [0, 0, 1, 1], [], []>} : vector<128x64xf32>, vector<64x128xf32>, vector<128x128xf32> -> vector<128x128xf32>
    %c0_9 = arith.constant 0 : index
    %c0_10 = arith.constant 0 : index
    %27 = vector.load %arg6[%c0_9, %c0_10] : memref<1x128xf32, #tpu.memory_space<vmem>>, vector<1x128xf32>
    %28 = vector.broadcast %27 : vector<1x128xf32> to vector<128x128xf32>
    %29 = arith.addf %26, %28 : vector<128x128xf32>
    %cst_11 = arith.constant 0.000000e+00 : f32
    %30 = vector.broadcast %cst_11 : f32 to vector<128x128xf32>
    %31 = arith.maximumf %29, %30 : vector<128x128xf32>
    %cst_12 = arith.constant dense<0xFF800000> : vector<128xf32>
    %32 = vector.multi_reduction <maximumf>, %31, %cst_12 [0] : vector<128x128xf32> to vector<128xf32>
    %33 = vector.shape_cast %32 : vector<128xf32> to vector<1x128xf32>
    %c0_13 = arith.constant 0 : index
    %c0_14 = arith.constant 0 : index
    %34 = vector.load %arg7[%c0_13, %c0_14] : memref<128x64xf32, #tpu.memory_space<vmem>>, vector<128x64xf32>
    %cst_15 = arith.constant dense<0.000000e+00> : vector<1x64xf32>
    %35 = tpu.matmul %33, %34, %cst_15 {dimension_numbers = #tpu.dot_dimension_numbers<[1], [0], [0], [1], [0, 0, 1, 1], [], []>} : vector<1x128xf32>, vector<128x64xf32>, vector<1x64xf32> -> vector<1x64xf32>
    %c0_16 = arith.constant 0 : index
    %c0_17 = arith.constant 0 : index
    %36 = vector.load %arg8[%c0_16, %c0_17] : memref<1x64xf32, #tpu.memory_space<vmem>>, vector<1x64xf32>
    %37 = arith.addf %35, %36 : vector<1x64xf32>
    %c0_18 = arith.constant 0 : index
    %c0_19 = arith.constant 0 : index
    %c0_20 = arith.constant 0 : index
    %38 = vector.load %arg2[%c0_18, %c0_19, %c0_20] : memref<1x2x7xf32, #tpu.memory_space<vmem>>, vector<1x2x7xf32>
    %39 = vector.shape_cast %38 : vector<1x2x7xf32> to vector<2x7xf32>
    %c0_21 = arith.constant 0 : index
    %c0_22 = arith.constant 0 : index
    %40 = vector.load %arg9[%c0_21, %c0_22] : memref<7x16xf32, #tpu.memory_space<vmem>>, vector<7x16xf32>
    %cst_23 = arith.constant dense<0.000000e+00> : vector<2x16xf32>
    %41 = tpu.matmul %39, %40, %cst_23 {dimension_numbers = #tpu.dot_dimension_numbers<[1], [0], [0], [1], [0, 0, 1, 1], [], []>} : vector<2x7xf32>, vector<7x16xf32>, vector<2x16xf32> -> vector<2x16xf32>
    %c0_24 = arith.constant 0 : index
    %c0_25 = arith.constant 0 : index
    %42 = vector.load %arg10[%c0_24, %c0_25] : memref<1x16xf32, #tpu.memory_space<vmem>>, vector<1x16xf32>
    %43 = vector.broadcast %42 : vector<1x16xf32> to vector<2x16xf32>
    %44 = arith.addf %41, %43 : vector<2x16xf32>
    %c0_26 = arith.constant 0 : index
    %c0_27 = arith.constant 0 : index
    %45 = vector.load %arg11[%c0_26, %c0_27] : memref<64x32xf32, #tpu.memory_space<vmem>>, vector<64x32xf32>
    %cst_28 = arith.constant dense<0.000000e+00> : vector<1x32xf32>
    %46 = tpu.matmul %37, %45, %cst_28 {dimension_numbers = #tpu.dot_dimension_numbers<[1], [0], [0], [1], [0, 0, 1, 1], [], []>} : vector<1x64xf32>, vector<64x32xf32>, vector<1x32xf32> -> vector<1x32xf32>
    %c0_29 = arith.constant 0 : index
    %c0_30 = arith.constant 0 : index
    %47 = vector.load %arg12[%c0_29, %c0_30] : memref<1x32xf32, #tpu.memory_space<vmem>>, vector<1x32xf32>
    %48 = arith.addf %46, %47 : vector<1x32xf32>
    %49 = vector.extract_strided_slice %48 {offsets = [0, 0], sizes = [1, 16], strides = [1, 1]} : vector<1x32xf32> to vector<1x16xf32>
    %50 = vector.extract_strided_slice %48 {offsets = [0, 16], sizes = [1, 16], strides = [1, 1]} : vector<1x32xf32> to vector<1x16xf32>
    %cst_31 = arith.constant 1.000000e+00 : f32
    %51 = vector.broadcast %cst_31 : f32 to vector<1x16xf32>
    %52 = arith.addf %51, %49 : vector<1x16xf32>
    %53 = vector.broadcast %52 : vector<1x16xf32> to vector<2x16xf32>
    %54 = arith.mulf %44, %53 : vector<2x16xf32>
    %55 = vector.broadcast %50 : vector<1x16xf32> to vector<2x16xf32>
    %56 = arith.addf %54, %55 : vector<2x16xf32>
    %c0_32 = arith.constant 0 : index
    %c0_33 = arith.constant 0 : index
    %57 = vector.load %arg13[%c0_32, %c0_33] : memref<16x32xf32, #tpu.memory_space<vmem>>, vector<16x32xf32>
    %cst_34 = arith.constant dense<0.000000e+00> : vector<2x32xf32>
    %58 = tpu.matmul %56, %57, %cst_34 {dimension_numbers = #tpu.dot_dimension_numbers<[1], [0], [0], [1], [0, 0, 1, 1], [], []>} : vector<2x16xf32>, vector<16x32xf32>, vector<2x32xf32> -> vector<2x32xf32>
    %c0_35 = arith.constant 0 : index
    %c0_36 = arith.constant 0 : index
    %59 = vector.load %arg14[%c0_35, %c0_36] : memref<1x32xf32, #tpu.memory_space<vmem>>, vector<1x32xf32>
    %60 = vector.broadcast %59 : vector<1x32xf32> to vector<2x32xf32>
    %61 = arith.addf %58, %60 : vector<2x32xf32>
    %cst_37 = arith.constant 0.000000e+00 : f32
    %62 = vector.broadcast %cst_37 : f32 to vector<2x32xf32>
    %63 = arith.maximumf %61, %62 : vector<2x32xf32>
    %c0_38 = arith.constant 0 : index
    %c0_39 = arith.constant 0 : index
    %64 = vector.load %arg15[%c0_38, %c0_39] : memref<32x16xf32, #tpu.memory_space<vmem>>, vector<32x16xf32>
    %cst_40 = arith.constant dense<0.000000e+00> : vector<2x16xf32>
    %65 = tpu.matmul %63, %64, %cst_40 {dimension_numbers = #tpu.dot_dimension_numbers<[1], [0], [0], [1], [0, 0, 1, 1], [], []>} : vector<2x32xf32>, vector<32x16xf32>, vector<2x16xf32> -> vector<2x16xf32>
    %c0_41 = arith.constant 0 : index
    %c0_42 = arith.constant 0 : index
    %66 = vector.load %arg16[%c0_41, %c0_42] : memref<1x16xf32, #tpu.memory_space<vmem>>, vector<1x16xf32>
    %67 = vector.broadcast %66 : vector<1x16xf32> to vector<2x16xf32>
    %68 = arith.addf %65, %67 : vector<2x16xf32>
    %69 = arith.addf %44, %68 : vector<2x16xf32>
    %c0_43 = arith.constant 0 : index
    %c0_44 = arith.constant 0 : index
    %70 = vector.load %arg17[%c0_43, %c0_44] : memref<16x4xf32, #tpu.memory_space<vmem>>, vector<16x4xf32>
    %cst_45 = arith.constant dense<0.000000e+00> : vector<2x4xf32>
    %71 = tpu.matmul %69, %70, %cst_45 {dimension_numbers = #tpu.dot_dimension_numbers<[1], [0], [0], [1], [0, 0, 1, 1], [], []>} : vector<2x16xf32>, vector<16x4xf32>, vector<2x4xf32> -> vector<2x4xf32>
    %c0_46 = arith.constant 0 : index
    %c0_47 = arith.constant 0 : index
    %72 = vector.load %arg18[%c0_46, %c0_47] : memref<1x4xf32, #tpu.memory_space<vmem>>, vector<1x4xf32>
    %73 = vector.broadcast %72 : vector<1x4xf32> to vector<2x4xf32>
    %74 = arith.addf %71, %73 : vector<2x4xf32>
    %c0_48 = arith.constant 0 : index
    %c0_49 = arith.constant 0 : index
    %c0_50 = arith.constant 0 : index
    %75 = vector.load %arg19[%c0_48, %c0_49, %c0_50] : memref<1x2x4xf32, #tpu.memory_space<vmem>>, vector<1x2x4xf32>
    %76 = vector.shape_cast %75 : vector<1x2x4xf32> to vector<2x4xf32>
    %77 = vector.shape_cast %74 : vector<2x4xf32> to vector<1x2x4xf32>
    tpu.vector_store %arg19[%c0_48, %c0_49, %c0_50], %77 {strides = array<i32>} : memref<1x2x4xf32, #tpu.memory_space<vmem>>, vector<1x2x4xf32>,
    %78 = vector.shape_cast %37 : vector<1x64xf32> to vector<1x64xf32>
    %79 = vector.broadcast %78 : vector<1x64xf32> to vector<2x64xf32>
    %c0_51 = arith.constant 0 : index
    %c0_52 = arith.constant 0 : index
    %c0_53 = arith.constant 0 : index
    %80 = vector.load %arg20[%c0_51, %c0_52, %c0_53] : memref<1x2x64xf32, #tpu.memory_space<vmem>>, vector<1x2x64xf32>
    %81 = vector.shape_cast %80 : vector<1x2x64xf32> to vector<2x64xf32>
    %82 = vector.shape_cast %79 : vector<2x64xf32> to vector<1x2x64xf32>
    tpu.vector_store %arg20[%c0_51, %c0_52, %c0_53], %82 {strides = array<i32>} : memref<1x2x64xf32, #tpu.memory_space<vmem>>, vector<1x2x64xf32>,
    return
  }
  func.func @transform_0(%arg0: i32) -> (i32, i32, i32) {
    %c0_i32 = arith.constant 0 : i32
    %c0_i32_0 = arith.constant 0 : i32
    %c0_i32_1 = arith.constant 0 : i32
    return %arg0, %c0_i32, %c0_i32_0 : i32, i32, i32
  }
  func.func @transform_1(%arg0: i32) -> (i32, i32, i32) {
    %c0_i32 = arith.constant 0 : i32
    %c0_i32_0 = arith.constant 0 : i32
    %c0_i32_1 = arith.constant 0 : i32
    return %arg0, %c0_i32, %c0_i32_0 : i32, i32, i32
  }
  func.func @transform_2(%arg0: i32) -> (i32, i32) {
    %c0_i32 = arith.constant 0 : i32
    %c0_i32_0 = arith.constant 0 : i32
    %c0_i32_1 = arith.constant 0 : i32
    return %c0_i32, %c0_i32_0 : i32, i32
  }
  func.func @transform_3(%arg0: i32) -> (i32, i32) {
    %c0_i32 = arith.constant 0 : i32
    %c0_i32_0 = arith.constant 0 : i32
    %c0_i32_1 = arith.constant 0 : i32
    return %c0_i32, %c0_i32_0 : i32, i32
  }
  func.func @transform_4(%arg0: i32) -> (i32, i32) {
    %c0_i32 = arith.constant 0 : i32
    %c0_i32_0 = arith.constant 0 : i32
    %c0_i32_1 = arith.constant 0 : i32
    return %c0_i32, %c0_i32_0 : i32, i32
  }
  func.func @transform_5(%arg0: i32) -> (i32, i32) {
    %c0_i32 = arith.constant 0 : i32
    %c0_i32_0 = arith.constant 0 : i32
    %c0_i32_1 = arith.constant 0 : i32
    return %c0_i32, %c0_i32_0 : i32, i32
  }
  func.func @transform_6(%arg0: i32) -> (i32, i32) {
    %c0_i32 = arith.constant 0 : i32
    %c0_i32_0 = arith.constant 0 : i32
    %c0_i32_1 = arith.constant 0 : i32
    return %c0_i32, %c0_i32_0 : i32, i32
  }
  func.func @transform_7(%arg0: i32) -> (i32, i32) {
    %c0_i32 = arith.constant 0 : i32
    %c0_i32_0 = arith.constant 0 : i32
    %c0_i32_1 = arith.constant 0 : i32
    return %c0_i32, %c0_i32_0 : i32, i32
  }
  func.func @transform_8(%arg0: i32) -> (i32, i32) {
    %c0_i32 = arith.constant 0 : i32
    %c0_i32_0 = arith.constant 0 : i32
    %c0_i32_1 = arith.constant 0 : i32
    return %c0_i32, %c0_i32_0 : i32, i32
  }
  func.func @transform_9(%arg0: i32) -> (i32, i32) {
    %c0_i32 = arith.constant 0 : i32
    %c0_i32_0 = arith.constant 0 : i32
    %c0_i32_1 = arith.constant 0 : i32
    return %c0_i32, %c0_i32_0 : i32, i32
  }
  func.func @transform_10(%arg0: i32) -> (i32, i32) {
    %c0_i32 = arith.constant 0 : i32
    %c0_i32_0 = arith.constant 0 : i32
    %c0_i32_1 = arith.constant 0 : i32
    return %c0_i32, %c0_i32_0 : i32, i32
  }
  func.func @transform_11(%arg0: i32) -> (i32, i32) {
    %c0_i32 = arith.constant 0 : i32
    %c0_i32_0 = arith.constant 0 : i32
    %c0_i32_1 = arith.constant 0 : i32
    return %c0_i32, %c0_i32_0 : i32, i32
  }
  func.func @transform_12(%arg0: i32) -> (i32, i32) {
    %c0_i32 = arith.constant 0 : i32
    %c0_i32_0 = arith.constant 0 : i32
    %c0_i32_1 = arith.constant 0 : i32
    return %c0_i32, %c0_i32_0 : i32, i32
  }
  func.func @transform_13(%arg0: i32) -> (i32, i32) {
    %c0_i32 = arith.constant 0 : i32
    %c0_i32_0 = arith.constant 0 : i32
    %c0_i32_1 = arith.constant 0 : i32
    return %c0_i32, %c0_i32_0 : i32, i32
  }
  func.func @transform_14(%arg0: i32) -> (i32, i32) {
    %c0_i32 = arith.constant 0 : i32
    %c0_i32_0 = arith.constant 0 : i32
    %c0_i32_1 = arith.constant 0 : i32
    return %c0_i32, %c0_i32_0 : i32, i32
  }
  func.func @transform_15(%arg0: i32) -> (i32, i32) {
    %c0_i32 = arith.constant 0 : i32
    %c0_i32_0 = arith.constant 0 : i32
    %c0_i32_1 = arith.constant 0 : i32
    return %c0_i32, %c0_i32_0 : i32, i32
  }
  func.func @transform_16(%arg0: i32) -> (i32, i32) {
    %c0_i32 = arith.constant 0 : i32
    %c0_i32_0 = arith.constant 0 : i32
    %c0_i32_1 = arith.constant 0 : i32
    return %c0_i32, %c0_i32_0 : i32, i32
  }
  func.func @transform_17(%arg0: i32) -> (i32, i32) {
    %c0_i32 = arith.constant 0 : i32
    %c0_i32_0 = arith.constant 0 : i32
    %c0_i32_1 = arith.constant 0 : i32
    return %c0_i32, %c0_i32_0 : i32, i32
  }
  func.func @transform_18(%arg0: i32) -> (i32, i32, i32) {
    %c0_i32 = arith.constant 0 : i32
    %c0_i32_0 = arith.constant 0 : i32
    %c0_i32_1 = arith.constant 0 : i32
    return %arg0, %c0_i32, %c0_i32_0 : i32, i32, i32
  }
  func.func @transform_19(%arg0: i32) -> (i32, i32, i32) {
    %c0_i32 = arith.constant 0 : i32
    %c0_i32_0 = arith.constant 0 : i32
    %c0_i32_1 = arith.constant 0 : i32
    return %arg0, %c0_i32, %c0_i32_0 : i32, i32, i32
  }
}

</mosaic_0001>

<llo_original>
// kernel: pc_conditioned_grasp_encoder_forward.1
$region0: #{pc_conditioned_grasp_encoder_forward.1}
  #allocation0 [shape = 'u32[]', space=smem, size = 0x4, offset = 0x4, fixed_abs, tag = 'smem constant byte address 0x4 - core index']
  #allocation1 [shape = 'u32[144,128]{1,0:T(1,128)}', space=vmem, size = 0x12000, scoped, tag = 'internal scratch']
  %s0 = inlined_call_operand.vmem [shape: f32[2,128,3], index: 0, kind: input, shape index: {}]
  %s1 = inlined_call_operand.vmem [shape: f32[2,2,7], index: 1, kind: input, shape index: {}]
  %s2 = inlined_call_operand.vmem [shape: f32[3,64], index: 2, kind: input, shape index: {}]
  %s3 = inlined_call_operand.vmem [shape: f32[1,64], index: 3, kind: input, shape index: {}]
  %s4 = inlined_call_operand.vmem [shape: f32[64,128], index: 4, kind: input, shape index: {}]
  %s5 = inlined_call_operand.vmem [shape: f32[1,128], index: 5, kind: input, shape index: {}]
  %s6 = inlined_call_operand.vmem [shape: f32[128,64], index: 6, kind: input, shape index: {}]
  %s7 = inlined_call_operand.vmem [shape: f32[1,64], index: 7, kind: input, shape index: {}]
  %s8 = inlined_call_operand.vmem [shape: f32[7,16], index: 8, kind: input, shape index: {}]
  %s9 = inlined_call_operand.vmem [shape: f32[1,16], index: 9, kind: input, shape index: {}]
  %s10 = inlined_call_operand.vmem [shape: f32[64,32], index: 10, kind: input, shape index: {}]
  %s11 = inlined_call_operand.vmem [shape: f32[1,32], index: 11, kind: input, shape index: {}]
  %s12 = inlined_call_operand.vmem [shape: f32[16,32], index: 12, kind: input, shape index: {}]
  %s13 = inlined_call_operand.vmem [shape: f32[1,32], index: 13, kind: input, shape index: {}]
  %s14 = inlined_call_operand.vmem [shape: f32[32,16], index: 14, kind: input, shape index: {}]
  %s15 = inlined_call_operand.vmem [shape: f32[1,16], index: 15, kind: input, shape index: {}]
  %s16 = inlined_call_operand.vmem [shape: f32[16,4], index: 16, kind: input, shape index: {}]
  %s17 = inlined_call_operand.vmem [shape: f32[1,4], index: 17, kind: input, shape index: {}]
  %s18 = inlined_call_operand.hbm [shape: f32[2,2,4], index: 18, kind: output, shape index: {0}]
  %s19 = inlined_call_operand.hbm [shape: f32[2,2,64], index: 19, kind: output, shape index: {1}]
  %20 = xla_tuple %s18, %s19
  %s21 = sld [smem:[#allocation0]]
  $region113: #{pc_conditioned_grasp_encoder_forward.1} parent=0
    _
  %s23 = ssub.s32 1, %s21
  %s24 = scalar_select 0, %s23, %s21
  $region1: #{pc_conditioned_grasp_encoder_forward.1} parent=0
    #allocation2 [shape = 'u8[2048]{0}', space=vmem, size = 0x800, scoped, tag = 'output window, operand 0']
    #allocation3 [shape = 's32[2]{0}', space=sflag, size = 0x8, scoped, tag = 'scoped memory for pc_conditioned_grasp_encoder_forward.1']
    #allocation4 [shape = 'u8[2048]{0}', space=vmem, size = 0x800, scoped, tag = 'output window, operand 1']
    #allocation5 [shape = 's32[2]{0}', space=sflag, size = 0x8, scoped, tag = 'scoped memory for pc_conditioned_grasp_encoder_forward.1']
    %25 = vsyncpa [#allocation3], 0
    %s26 = scalar_lea.sflag [#allocation3], 1
    %27 = vsyncpa %s26, 0
    %28 = vsyncpa [#allocation5], 0
    %s29 = scalar_lea.sflag [#allocation5], 1
    %30 = vsyncpa %s29, 0
    loop: start=0, step=1, limit=4
    $region2: #{pc_conditioned_grasp_encoder_forward.1} parent=1 // loop_pre_header
      _
    $region3: #{pc_conditioned_grasp_encoder_forward.1} parent=1 // loop_header
      %s32 = sphi 0, %s36
      %p33 = scmp.ge.s32.totalorder %s32, 4
      %s42 = sphi 0, %s44
      %s45 = sphi 0, %s42
      %s46 = sphi 0, %s45
      %s62 = sphi 0, %s46
      %s68 = sphi 0, %s70
      %s71 = sphi 0, %s68
      %s72 = sphi 0, %s71
      %s88 = sphi 0, %s72
      %s92 = sphi 0, %s92
      %s94 = sphi 0, %s92
      %s95 = sphi 0, %s94
      %s109 = sphi 0, %s95
      %s113 = sphi 0, %s113
      %s115 = sphi 0, %s113
      %s116 = sphi 0, %s115
      %s130 = sphi 0, %s116
      %s134 = sphi 0, %s134
      %s136 = sphi 0, %s134
      %s137 = sphi 0, %s136
      %s151 = sphi 0, %s137
      %s155 = sphi 0, %s155
      %s157 = sphi 0, %s155
      %s158 = sphi 0, %s157
      %s172 = sphi 0, %s158
      %s176 = sphi 0, %s176
      %s178 = sphi 0, %s176
      %s179 = sphi 0, %s178
      %s193 = sphi 0, %s179
      %s197 = sphi 0, %s197
      %s199 = sphi 0, %s197
      %s200 = sphi 0, %s199
      %s214 = sphi 0, %s200
      %s218 = sphi 0, %s218
      %s220 = sphi 0, %s218
      %s221 = sphi 0, %s220
      %s235 = sphi 0, %s221
      %s239 = sphi 0, %s239
      %s241 = sphi 0, %s239
      %s242 = sphi 0, %s241
      %s256 = sphi 0, %s242
      %s260 = sphi 0, %s260
      %s262 = sphi 0, %s260
      %s263 = sphi 0, %s262
      %s277 = sphi 0, %s263
      %s281 = sphi 0, %s281
      %s283 = sphi 0, %s281
      %s284 = sphi 0, %s283
      %s298 = sphi 0, %s284
      %s302 = sphi 0, %s302
      %s304 = sphi 0, %s302
      %s305 = sphi 0, %s304
      %s319 = sphi 0, %s305
      %s323 = sphi 0, %s323
      %s325 = sphi 0, %s323
      %s326 = sphi 0, %s325
      %s340 = sphi 0, %s326
      %s344 = sphi 0, %s344
      %s346 = sphi 0, %s344
      %s347 = sphi 0, %s346
      %s361 = sphi 0, %s347
      %s365 = sphi 0, %s365
      %s367 = sphi 0, %s365
      %s368 = sphi 0, %s367
      %s382 = sphi 0, %s368
      %s386 = sphi 0, %s386
      %s388 = sphi 0, %s386
      %s389 = sphi 0, %s388
      %s403 = sphi 0, %s389
      %s407 = sphi 0, %s407
      %s409 = sphi 0, %s407
      %s410 = sphi 0, %s409
      %s424 = sphi 0, %s410
      %s430 = sphi 0, %s432
      %s433 = sphi 0, %s430
      %s434 = sphi 0, %s433
      %s450 = sphi 0, %s434
      %s456 = sphi 0, %s458
      %s459 = sphi 0, %s456
      %s460 = sphi 0, %s459
      %s476 = sphi 0, %s460
    $region4: #{pc_conditioned_grasp_encoder_forward.1} parent=1 // loop_header_branch
      %35 = sbr.rel (%p33) target = $region8
    $region5: #{pc_conditioned_grasp_encoder_forward.1} parent=1 // loop_body
      %s37 = ssub.s32 %s32, 1
      %s38 = ssub.s32 %s32, 2
      %s39 = sadd.s32 %s32, 1
      %s40 = ssub.s32 %s32, %s39
      %p41 = scmp.eq.s32.totalorder %s40, 0
      %s43 = sadd.s32 %s42, 1
      %s44 = scalar_select %p41, %s42, %s43
      %p47 = pneg %p41
      %p48 = scmp.eq.s32.totalorder %s32, 1
      %p49 = por %p47, %p48
      %p50 = scmp.ne.s32.totalorder %s42, %s45
      %p51 = scmp.eq.s32.totalorder %s32, 0
      %p52 = por %p50, %p51
      %p53 = scmp.ne.s32.totalorder %s42, %s45
      %p54 = scmp.eq.s32.totalorder %s37, 1
      %p55 = por %p53, %p54
      %p56 = scmp.ne.s32.totalorder %s45, %s46
      %p57 = scmp.eq.s32.totalorder %s37, 0
      %p58 = por %p56, %p57
      %p59 = scmp.ne.s32.totalorder %s45, %s46
      %p60 = scmp.eq.s32.totalorder %s38, 1
      %p61 = por %p59, %p60
      %p63 = scmp.ne.s32.totalorder %s46, %s62
      %p64 = scmp.eq.s32.totalorder %s38, 0
      %p65 = por %p63, %p64
      %s66 = ssub.s32 %s32, %s39
      %p67 = scmp.eq.s32.totalorder %s66, 0
      %s69 = sadd.s32 %s68, 1
      %s70 = scalar_select %p67, %s68, %s69
      %p73 = pneg %p67
      %p74 = scmp.eq.s32.totalorder %s32, 1
      %p75 = por %p73, %p74
      %p76 = scmp.ne.s32.totalorder %s68, %s71
      %p77 = scmp.eq.s32.totalorder %s32, 0
      %p78 = por %p76, %p77
      %p79 = scmp.ne.s32.totalorder %s68, %s71
      %p80 = scmp.eq.s32.totalorder %s37, 1
      %p81 = por %p79, %p80
      %p82 = scmp.ne.s32.totalorder %s71, %s72
      %p83 = scmp.eq.s32.totalorder %s37, 0
      %p84 = por %p82, %p83
      %p85 = scmp.ne.s32.totalorder %s71, %s72
      %p86 = scmp.eq.s32.totalorder %s38, 1
      %p87 = por %p85, %p86
      %p89 = scmp.ne.s32.totalorder %s72, %s88
      %p90 = scmp.eq.s32.totalorder %s38, 0
      %p91 = por %p89, %p90
      %s93 = sadd.s32 %s92, 1
      %p96 = scmp.eq.s32.totalorder %s32, 1
      %p97 = scmp.ne.s32.totalorder %s92, %s94
      %p98 = scmp.eq.s32.totalorder %s32, 0
      %p99 = por %p97, %p98
      %p100 = scmp.ne.s32.totalorder %s92, %s94
      %p101 = scmp.eq.s32.totalorder %s37, 1
      %p102 = por %p100, %p101
      %p103 = scmp.ne.s32.totalorder %s94, %s95
      %p104 = scmp.eq.s32.totalorder %s37, 0
      %p105 = por %p103, %p104
      %p106 = scmp.ne.s32.totalorder %s94, %s95
      %p107 = scmp.eq.s32.totalorder %s38, 1
      %p108 = por %p106, %p107
      %p110 = scmp.ne.s32.totalorder %s95, %s109
      %p111 = scmp.eq.s32.totalorder %s38, 0
      %p112 = por %p110, %p111
      %s114 = sadd.s32 %s113, 1
      %p117 = scmp.eq.s32.totalorder %s32, 1
      %p118 = scmp.ne.s32.totalorder %s113, %s115
      %p119 = scmp.eq.s32.totalorder %s32, 0
      %p120 = por %p118, %p119
      %p121 = scmp.ne.s32.totalorder %s113, %s115
      %p122 = scmp.eq.s32.totalorder %s37, 1
      %p123 = por %p121, %p122
      %p124 = scmp.ne.s32.totalorder %s115, %s116
      %p125 = scmp.eq.s32.totalorder %s37, 0
      %p126 = por %p124, %p125
      %p127 = scmp.ne.s32.totalorder %s115, %s116
      %p128 = scmp.eq.s32.totalorder %s38, 1
      %p129 = por %p127, %p128
      %p131 = scmp.ne.s32.totalorder %s116, %s130
      %p132 = scmp.eq.s32.totalorder %s38, 0
      %p133 = por %p131, %p132
      %s135 = sadd.s32 %s134, 1
      %p138 = scmp.eq.s32.totalorder %s32, 1
      %p139 = scmp.ne.s32.totalorder %s134, %s136
      %p140 = scmp.eq.s32.totalorder %s32, 0
      %p141 = por %p139, %p140
      %p142 = scmp.ne.s32.totalorder %s134, %s136
      %p143 = scmp.eq.s32.totalorder %s37, 1
      %p144 = por %p142, %p143
      %p145 = scmp.ne.s32.totalorder %s136, %s137
      %p146 = scmp.eq.s32.totalorder %s37, 0
      %p147 = por %p145, %p146
      %p148 = scmp.ne.s32.totalorder %s136, %s137
      %p149 = scmp.eq.s32.totalorder %s38, 1
      %p150 = por %p148, %p149
      %p152 = scmp.ne.s32.totalorder %s137, %s151
      %p153 = scmp.eq.s32.totalorder %s38, 0
      %p154 = por %p152, %p153
      %s156 = sadd.s32 %s155, 1
      %p159 = scmp.eq.s32.totalorder %s32, 1
      %p160 = scmp.ne.s32.totalorder %s155, %s157
      %p161 = scmp.eq.s32.totalorder %s32, 0
      %p162 = por %p160, %p161
      %p163 = scmp.ne.s32.totalorder %s155, %s157
      %p164 = scmp.eq.s32.totalorder %s37, 1
      %p165 = por %p163, %p164
      %p166 = scmp.ne.s32.totalorder %s157, %s158
      %p167 = scmp.eq.s32.totalorder %s37, 0
      %p168 = por %p166, %p167
      %p169 = scmp.ne.s32.totalorder %s157, %s158
      %p170 = scmp.eq.s32.totalorder %s38, 1
      %p171 = por %p169, %p170
      %p173 = scmp.ne.s32.totalorder %s158, %s172
      %p174 = scmp.eq.s32.totalorder %s38, 0
      %p175 = por %p173, %p174
      %s177 = sadd.s32 %s176, 1
      %p180 = scmp.eq.s32.totalorder %s32, 1
      %p181 = scmp.ne.s32.totalorder %s176, %s178
      %p182 = scmp.eq.s32.totalorder %s32, 0
      %p183 = por %p181, %p182
      %p184 = scmp.ne.s32.totalorder %s176, %s178
      %p185 = scmp.eq.s32.totalorder %s37, 1
      %p186 = por %p184, %p185
      %p187 = scmp.ne.s32.totalorder %s178, %s179
      %p188 = scmp.eq.s32.totalorder %s37, 0
      %p189 = por %p187, %p188
      %p190 = scmp.ne.s32.totalorder %s178, %s179
      %p191 = scmp.eq.s32.totalorder %s38, 1
      %p192 = por %p190, %p191
      %p194 = scmp.ne.s32.totalorder %s179, %s193
      %p195 = scmp.eq.s32.totalorder %s38, 0
      %p196 = por %p194, %p195
      %s198 = sadd.s32 %s197, 1
      %p201 = scmp.eq.s32.totalorder %s32, 1
      %p202 = scmp.ne.s32.totalorder %s197, %s199
      %p203 = scmp.eq.s32.totalorder %s32, 0
      %p204 = por %p202, %p203
      %p205 = scmp.ne.s32.totalorder %s197, %s199
      %p206 = scmp.eq.s32.totalorder %s37, 1
      %p207 = por %p205, %p206
      %p208 = scmp.ne.s32.totalorder %s199, %s200
      %p209 = scmp.eq.s32.totalorder %s37, 0
      %p210 = por %p208, %p209
      %p211 = scmp.ne.s32.totalorder %s199, %s200
      %p212 = scmp.eq.s32.totalorder %s38, 1
      %p213 = por %p211, %p212
      %p215 = scmp.ne.s32.totalorder %s200, %s214
      %p216 = scmp.eq.s32.totalorder %s38, 0
      %p217 = por %p215, %p216
      %s219 = sadd.s32 %s218, 1
      %p222 = scmp.eq.s32.totalorder %s32, 1
      %p223 = scmp.ne.s32.totalorder %s218, %s220
      %p224 = scmp.eq.s32.totalorder %s32, 0
      %p225 = por %p223, %p224
      %p226 = scmp.ne.s32.totalorder %s218, %s220
      %p227 = scmp.eq.s32.totalorder %s37, 1
      %p228 = por %p226, %p227
      %p229 = scmp.ne.s32.totalorder %s220, %s221
      %p230 = scmp.eq.s32.totalorder %s37, 0
      %p231 = por %p229, %p230
      %p232 = scmp.ne.s32.totalorder %s220, %s221
      %p233 = scmp.eq.s32.totalorder %s38, 1
      %p234 = por %p232, %p233
      %p236 = scmp.ne.s32.totalorder %s221, %s235
      %p237 = scmp.eq.s32.totalorder %s38, 0
      %p238 = por %p236, %p237
      %s240 = sadd.s32 %s239, 1
      %p243 = scmp.eq.s32.totalorder %s32, 1
      %p244 = scmp.ne.s32.totalorder %s239, %s241
      %p245 = scmp.eq.s32.totalorder %s32, 0
      %p246 = por %p244, %p245
      %p247 = scmp.ne.s32.totalorder %s239, %s241
      %p248 = scmp.eq.s32.totalorder %s37, 1
      %p249 = por %p247, %p248
      %p250 = scmp.ne.s32.totalorder %s241, %s242
      %p251 = scmp.eq.s32.totalorder %s37, 0
      %p252 = por %p250, %p251
      %p253 = scmp.ne.s32.totalorder %s241, %s242
      %p254 = scmp.eq.s32.totalorder %s38, 1
      %p255 = por %p253, %p254
      %p257 = scmp.ne.s32.totalorder %s242, %s256
      %p258 = scmp.eq.s32.totalorder %s38, 0
      %p259 = por %p257, %p258
      %s261 = sadd.s32 %s260, 1
      %p264 = scmp.eq.s32.totalorder %s32, 1
      %p265 = scmp.ne.s32.totalorder %s260, %s262
      %p266 = scmp.eq.s32.totalorder %s32, 0
      %p267 = por %p265, %p266
      %p268 = scmp.ne.s32.totalorder %s260, %s262
      %p269 = scmp.eq.s32.totalorder %s37, 1
      %p270 = por %p268, %p269
      %p271 = scmp.ne.s32.totalorder %s262, %s263
      %p272 = scmp.eq.s32.totalorder %s37, 0
      %p273 = por %p271, %p272
      %p274 = scmp.ne.s32.totalorder %s262, %s263
      %p275 = scmp.eq.s32.totalorder %s38, 1
      %p276 = por %p274, %p275
      %p278 = scmp.ne.s32.totalorder %s263, %s277
      %p279 = scmp.eq.s32.totalorder %s38, 0
      %p280 = por %p278, %p279
      %s282 = sadd.s32 %s281, 1
      %p285 = scmp.eq.s32.totalorder %s32, 1
      %p286 = scmp.ne.s32.totalorder %s281, %s283
      %p287 = scmp.eq.s32.totalorder %s32, 0
      %p288 = por %p286, %p287
      %p289 = scmp.ne.s32.totalorder %s281, %s283
      %p290 = scmp.eq.s32.totalorder %s37, 1
      %p291 = por %p289, %p290
      %p292 = scmp.ne.s32.totalorder %s283, %s284
      %p293 = scmp.eq.s32.totalorder %s37, 0
      %p294 = por %p292, %p293
      %p295 = scmp.ne.s32.totalorder %s283, %s284
      %p296 = scmp.eq.s32.totalorder %s38, 1
      %p297 = por %p295, %p296
      %p299 = scmp.ne.s32.totalorder %s284, %s298
      %p300 = scmp.eq.s32.totalorder %s38, 0
      %p301 = por %p299, %p300
      %s303 = sadd.s32 %s302, 1
      %p306 = scmp.eq.s32.totalorder %s32, 1
      %p307 = scmp.ne.s32.totalorder %s302, %s304
      %p308 = scmp.eq.s32.totalorder %s32, 0
      %p309 = por %p307, %p308
      %p310 = scmp.ne.s32.totalorder %s302, %s304
      %p311 = scmp.eq.s32.totalorder %s37, 1
      %p312 = por %p310, %p311
      %p313 = scmp.ne.s32.totalorder %s304, %s305
      %p314 = scmp.eq.s32.totalorder %s37, 0
      %p315 = por %p313, %p314
      %p316 = scmp.ne.s32.totalorder %s304, %s305
      %p317 = scmp.eq.s32.totalorder %s38, 1
      %p318 = por %p316, %p317
      %p320 = scmp.ne.s32.totalorder %s305, %s319
      %p321 = scmp.eq.s32.totalorder %s38, 0
      %p322 = por %p320, %p321
      %s324 = sadd.s32 %s323, 1
      %p327 = scmp.eq.s32.totalorder %s32, 1
      %p328 = scmp.ne.s32.totalorder %s323, %s325
      %p329 = scmp.eq.s32.totalorder %s32, 0
      %p330 = por %p328, %p329
      %p331 = scmp.ne.s32.totalorder %s323, %s325
      %p332 = scmp.eq.s32.totalorder %s37, 1
      %p333 = por %p331, %p332
      %p334 = scmp.ne.s32.totalorder %s325, %s326
      %p335 = scmp.eq.s32.totalorder %s37, 0
      %p336 = por %p334, %p335
      %p337 = scmp.ne.s32.totalorder %s325, %s326
      %p338 = scmp.eq.s32.totalorder %s38, 1
      %p339 = por %p337, %p338
      %p341 = scmp.ne.s32.totalorder %s326, %s340
      %p342 = scmp.eq.s32.totalorder %s38, 0
      %p343 = por %p341, %p342
      %s345 = sadd.s32 %s344, 1
      %p348 = scmp.eq.s32.totalorder %s32, 1
      %p349 = scmp.ne.s32.totalorder %s344, %s346
      %p350 = scmp.eq.s32.totalorder %s32, 0
      %p351 = por %p349, %p350
      %p352 = scmp.ne.s32.totalorder %s344, %s346
      %p353 = scmp.eq.s32.totalorder %s37, 1
      %p354 = por %p352, %p353
      %p355 = scmp.ne.s32.totalorder %s346, %s347
      %p356 = scmp.eq.s32.totalorder %s37, 0
      %p357 = por %p355, %p356
      %p358 = scmp.ne.s32.totalorder %s346, %s347
      %p359 = scmp.eq.s32.totalorder %s38, 1
      %p360 = por %p358, %p359
      %p362 = scmp.ne.s32.totalorder %s347, %s361
      %p363 = scmp.eq.s32.totalorder %s38, 0
      %p364 = por %p362, %p363
      %s366 = sadd.s32 %s365, 1
      %p369 = scmp.eq.s32.totalorder %s32, 1
      %p370 = scmp.ne.s32.totalorder %s365, %s367
      %p371 = scmp.eq.s32.totalorder %s32, 0
      %p372 = por %p370, %p371
      %p373 = scmp.ne.s32.totalorder %s365, %s367
      %p374 = scmp.eq.s32.totalorder %s37, 1
      %p375 = por %p373, %p374
      %p376 = scmp.ne.s32.totalorder %s367, %s368
      %p377 = scmp.eq.s32.totalorder %s37, 0
      %p378 = por %p376, %p377
      %p379 = scmp.ne.s32.totalorder %s367, %s368
      %p380 = scmp.eq.s32.totalorder %s38, 1
      %p381 = por %p379, %p380
      %p383 = scmp.ne.s32.totalorder %s368, %s382
      %p384 = scmp.eq.s32.totalorder %s38, 0
      %p385 = por %p383, %p384
      %s387 = sadd.s32 %s386, 1
      %p390 = scmp.eq.s32.totalorder %s32, 1
      %p391 = scmp.ne.s32.totalorder %s386, %s388
      %p392 = scmp.eq.s32.totalorder %s32, 0
      %p393 = por %p391, %p392
      %p394 = scmp.ne.s32.totalorder %s386, %s388
      %p395 = scmp.eq.s32.totalorder %s37, 1
      %p396 = por %p394, %p395
      %p397 = scmp.ne.s32.totalorder %s388, %s389
      %p398 = scmp.eq.s32.totalorder %s37, 0
      %p399 = por %p397, %p398
      %p400 = scmp.ne.s32.totalorder %s388, %s389
      %p401 = scmp.eq.s32.totalorder %s38, 1
      %p402 = por %p400, %p401
      %p404 = scmp.ne.s32.totalorder %s389, %s403
      %p405 = scmp.eq.s32.totalorder %s38, 0
      %p406 = por %p404, %p405
      %s408 = sadd.s32 %s407, 1
      %p411 = scmp.eq.s32.totalorder %s32, 1
      %p412 = scmp.ne.s32.totalorder %s407, %s409
      %p413 = scmp.eq.s32.totalorder %s32, 0
      %p414 = por %p412, %p413
      %p415 = scmp.ne.s32.totalorder %s407, %s409
      %p416 = scmp.eq.s32.totalorder %s37, 1
      %p417 = por %p415, %p416
      %p418 = scmp.ne.s32.totalorder %s409, %s410
      %p419 = scmp.eq.s32.totalorder %s37, 0
      %p420 = por %p418, %p419
      %p421 = scmp.ne.s32.totalorder %s409, %s410
      %p422 = scmp.eq.s32.totalorder %s38, 1
      %p423 = por %p421, %p422
      %p425 = scmp.ne.s32.totalorder %s410, %s424
      %p426 = scmp.eq.s32.totalorder %s38, 0
      %p427 = por %p425, %p426
      %s428 = ssub.s32 %s32, %s39
      %p429 = scmp.eq.s32.totalorder %s428, 0
      %s431 = sadd.s32 %s430, 1
      %s432 = scalar_select %p429, %s430, %s431
      %p435 = pneg %p429
      %p436 = scmp.eq.s32.totalorder %s32, 1
      %p437 = por %p435, %p436
      %p438 = scmp.ne.s32.totalorder %s430, %s433
      %p439 = scmp.eq.s32.totalorder %s32, 0
      %p440 = por %p438, %p439
      %p441 = scmp.ne.s32.totalorder %s430, %s433
      %p442 = scmp.eq.s32.totalorder %s37, 1
      %p443 = por %p441, %p442
      %p444 = scmp.ne.s32.totalorder %s433, %s434
      %p445 = scmp.eq.s32.totalorder %s37, 0
      %p446 = por %p444, %p445
      %p447 = scmp.ne.s32.totalorder %s433, %s434
      %p448 = scmp.eq.s32.totalorder %s38, 1
      %p449 = por %p447, %p448
      %p451 = scmp.ne.s32.totalorder %s434, %s450
      %p452 = scmp.eq.s32.totalorder %s38, 0
      %p453 = por %p451, %p452
      %s454 = ssub.s32 %s32, %s39
      %p455 = scmp.eq.s32.totalorder %s454, 0
      %s457 = sadd.s32 %s456, 1
      %s458 = scalar_select %p455, %s456, %s457
      %p461 = pneg %p455
      %p462 = scmp.eq.s32.totalorder %s32, 1
      %p463 = por %p461, %p462
      %p464 = scmp.ne.s32.totalorder %s456, %s459
      %p465 = scmp.eq.s32.totalorder %s32, 0
      %p466 = por %p464, %p465
      %p467 = scmp.ne.s32.totalorder %s456, %s459
      %p468 = scmp.eq.s32.totalorder %s37, 1
      %p469 = por %p467, %p468
      %p470 = scmp.ne.s32.totalorder %s459, %s460
      %p471 = scmp.eq.s32.totalorder %s37, 0
      %p472 = por %p470, %p471
      %p473 = scmp.ne.s32.totalorder %s459, %s460
      %p474 = scmp.eq.s32.totalorder %s38, 1
      %p475 = por %p473, %p474
      %p477 = scmp.ne.s32.totalorder %s460, %s476
      %p478 = scmp.eq.s32.totalorder %s38, 0
      %p479 = por %p477, %p478
      %p480 = scmp.le.s32.totalorder 1, %s32
      %p481 = scmp.lt.s32.totalorder %s32, 3
      %p482 = pnand %p480, %p481
      %p483 = pneg %p482
      // Predicated region
      $region9: #{pc_conditioned_grasp_encoder_forward.1} parent=5 // pred_check
        _
      $region10: #{pc_conditioned_grasp_encoder_forward.1} parent=5 // pred_check_branch
        %485 = sbr.rel (%p482) target = $region12
      $region11: #{pc_conditioned_grasp_encoder_forward.1} parent=5 // pred_region
        %s486 = ssub.s32 %s32, 1
        // Predicated region
        $region13: #{pc_conditioned_grasp_encoder_forward.1} parent=11 // pred_check
          %p487 = pneg %p105
        $region14: #{pc_conditioned_grasp_encoder_forward.1} parent=11 // pred_check_branch
          %489 = sbr.rel (%p487) target = $region16
        $region15: #{pc_conditioned_grasp_encoder_forward.1} parent=11 // pred_region
          _
        $region16: #{pc_conditioned_grasp_encoder_forward.1} parent=11 // pred_fallthru
          _
        // Predicated region
        $region17: #{pc_conditioned_grasp_encoder_forward.1} parent=11 // pred_check
          %p490 = pneg %p126
        $region18: #{pc_conditioned_grasp_encoder_forward.1} parent=11 // pred_check_branch
          %492 = sbr.rel (%p490) target = $region20
        $region19: #{pc_conditioned_grasp_encoder_forward.1} parent=11 // pred_region
          _
        $region20: #{pc_conditioned_grasp_encoder_forward.1} parent=11 // pred_fallthru
          _
        // Predicated region
        $region21: #{pc_conditioned_grasp_encoder_forward.1} parent=11 // pred_check
          %p493 = pneg %p147
        $region22: #{pc_conditioned_grasp_encoder_forward.1} parent=11 // pred_check_branch
          %495 = sbr.rel (%p493) target = $region24
        $region23: #{pc_conditioned_grasp_encoder_forward.1} parent=11 // pred_region
          _
        $region24: #{pc_conditioned_grasp_encoder_forward.1} parent=11 // pred_fallthru
          _
        // Predicated region
        $region25: #{pc_conditioned_grasp_encoder_forward.1} parent=11 // pred_check
          %p496 = pneg %p168
        $region26: #{pc_conditioned_grasp_encoder_forward.1} parent=11 // pred_check_branch
          %498 = sbr.rel (%p496) target = $region28
        $region27: #{pc_conditioned_grasp_encoder_forward.1} parent=11 // pred_region
          _
        $region28: #{pc_conditioned_grasp_encoder_forward.1} parent=11 // pred_fallthru
          _
        // Predicated region
        $region29: #{pc_conditioned_grasp_encoder_forward.1} parent=11 // pred_check
          %p499 = pneg %p189
        $region30: #{pc_conditioned_grasp_encoder_forward.1} parent=11 // pred_check_branch
          %501 = sbr.rel (%p499) target = $region32
        $region31: #{pc_conditioned_grasp_encoder_forward.1} parent=11 // pred_region
          _
        $region32: #{pc_conditioned_grasp_encoder_forward.1} parent=11 // pred_fallthru
          _
        // Predicated region
        $region33: #{pc_conditioned_grasp_encoder_forward.1} parent=11 // pred_check
          %p502 = pneg %p210
        $region34: #{pc_conditioned_grasp_encoder_forward.1} parent=11 // pred_check_branch
          %504 = sbr.rel (%p502) target = $region36
        $region35: #{pc_conditioned_grasp_encoder_forward.1} parent=11 // pred_region
          _
        $region36: #{pc_conditioned_grasp_encoder_forward.1} parent=11 // pred_fallthru
          _
        // Predicated region
        $region37: #{pc_conditioned_grasp_encoder_forward.1} parent=11 // pred_check
          %p505 = pneg %p231
        $region38: #{pc_conditioned_grasp_encoder_forward.1} parent=11 // pred_check_branch
          %507 = sbr.rel (%p505) target = $region40
        $region39: #{pc_conditioned_grasp_encoder_forward.1} parent=11 // pred_region
          _
        $region40: #{pc_conditioned_grasp_encoder_forward.1} parent=11 // pred_fallthru
          _
        // Predicated region
        $region41: #{pc_conditioned_grasp_encoder_forward.1} parent=11 // pred_check
          %p508 = pneg %p252
        $region42: #{pc_conditioned_grasp_encoder_forward.1} parent=11 // pred_check_branch
          %510 = sbr.rel (%p508) target = $region44
        $region43: #{pc_conditioned_grasp_encoder_forward.1} parent=11 // pred_region
          _
        $region44: #{pc_conditioned_grasp_encoder_forward.1} parent=11 // pred_fallthru
          _
        // Predicated region
        $region45: #{pc_conditioned_grasp_encoder_forward.1} parent=11 // pred_check
          %p511 = pneg %p273
        $region46: #{pc_conditioned_grasp_encoder_forward.1} parent=11 // pred_check_branch
          %513 = sbr.rel (%p511) target = $region48
        $region47: #{pc_conditioned_grasp_encoder_forward.1} parent=11 // pred_region
          _
        $region48: #{pc_conditioned_grasp_encoder_forward.1} parent=11 // pred_fallthru
          _
        // Predicated region
        $region49: #{pc_conditioned_grasp_encoder_forward.1} parent=11 // pred_check
          %p514 = pneg %p294
        $region50: #{pc_conditioned_grasp_encoder_forward.1} parent=11 // pred_check_branch
          %516 = sbr.rel (%p514) target = $region52
        $region51: #{pc_conditioned_grasp_encoder_forward.1} parent=11 // pred_region
          _
        $region52: #{pc_conditioned_grasp_encoder_forward.1} parent=11 // pred_fallthru
          _
        // Predicated region
        $region53: #{pc_conditioned_grasp_encoder_forward.1} parent=11 // pred_check
          %p517 = pneg %p315
        $region54: #{pc_conditioned_grasp_encoder_forward.1} parent=11 // pred_check_branch
          %519 = sbr.rel (%p517) target = $region56
        $region55: #{pc_conditioned_grasp_encoder_forward.1} parent=11 // pred_region
          _
        $region56: #{pc_conditioned_grasp_encoder_forward.1} parent=11 // pred_fallthru
          _
        // Predicated region
        $region57: #{pc_conditioned_grasp_encoder_forward.1} parent=11 // pred_check
          %p520 = pneg %p336
        $region58: #{pc_conditioned_grasp_encoder_forward.1} parent=11 // pred_check_branch
          %522 = sbr.rel (%p520) target = $region60
        $region59: #{pc_conditioned_grasp_encoder_forward.1} parent=11 // pred_region
          _
        $region60: #{pc_conditioned_grasp_encoder_forward.1} parent=11 // pred_fallthru
          _
        // Predicated region
        $region61: #{pc_conditioned_grasp_encoder_forward.1} parent=11 // pred_check
          %p523 = pneg %p357
        $region62: #{pc_conditioned_grasp_encoder_forward.1} parent=11 // pred_check_branch
          %525 = sbr.rel (%p523) target = $region64
        $region63: #{pc_conditioned_grasp_encoder_forward.1} parent=11 // pred_region
          _
        $region64: #{pc_conditioned_grasp_encoder_forward.1} parent=11 // pred_fallthru
          _
        // Predicated region
        $region65: #{pc_conditioned_grasp_encoder_forward.1} parent=11 // pred_check
          %p526 = pneg %p378
        $region66: #{pc_conditioned_grasp_encoder_forward.1} parent=11 // pred_check_branch
          %528 = sbr.rel (%p526) target = $region68
        $region67: #{pc_conditioned_grasp_encoder_forward.1} parent=11 // pred_region
          _
        $region68: #{pc_conditioned_grasp_encoder_forward.1} parent=11 // pred_fallthru
          _
        // Predicated region
        $region69: #{pc_conditioned_grasp_encoder_forward.1} parent=11 // pred_check
          %p529 = pneg %p399
        $region70: #{pc_conditioned_grasp_encoder_forward.1} parent=11 // pred_check_branch
          %531 = sbr.rel (%p529) target = $region72
        $region71: #{pc_conditioned_grasp_encoder_forward.1} parent=11 // pred_region
          _
        $region72: #{pc_conditioned_grasp_encoder_forward.1} parent=11 // pred_fallthru
          _
        // Predicated region
        $region73: #{pc_conditioned_grasp_encoder_forward.1} parent=11 // pred_check
          %p532 = pneg %p420
        $region74: #{pc_conditioned_grasp_encoder_forward.1} parent=11 // pred_check_branch
          %534 = sbr.rel (%p532) target = $region76
        $region75: #{pc_conditioned_grasp_encoder_forward.1} parent=11 // pred_region
          _
        $region76: #{pc_conditioned_grasp_encoder_forward.1} parent=11 // pred_fallthru
          _
      $region12: #{pc_conditioned_grasp_encoder_forward.1} parent=5 // pred_fallthru
        _
      %p535 = scmp.lt.s32.totalorder %s32, 2
      // Predicated region
      $region77: #{pc_conditioned_grasp_encoder_forward.1} parent=5 // pred_check
        %p536 = pneg %p535
      $region78: #{pc_conditioned_grasp_encoder_forward.1} parent=5 // pred_check_branch
        %538 = sbr.rel (%p536) target = $region80
      $region79: #{pc_conditioned_grasp_encoder_forward.1} parent=5 // pred_region
        // Predicated region
        $region81: #{pc_conditioned_grasp_encoder_forward.1} parent=79 // pred_check
          %p539 = pneg %p52
        $region82: #{pc_conditioned_grasp_encoder_forward.1} parent=79 // pred_check_branch
          %541 = sbr.rel (%p539) target = $region84
        $region83: #{pc_conditioned_grasp_encoder_forward.1} parent=79 // pred_region
          %p542 = scmp.lt.s32.totalorder %s32, 1
          %s543 = scalar_select %p542, %s32, 1
          %s544 = smul.addr %s543, 16
          %s545 = smul.addr %s544, 8
          %s546 = scalar_lea.vmem %s0, %s545
        $region84: #{pc_conditioned_grasp_encoder_forward.1} parent=79 // pred_fallthru
          _
        // Predicated region
        $region85: #{pc_conditioned_grasp_encoder_forward.1} parent=79 // pred_check
          %p547 = pneg %p78
        $region86: #{pc_conditioned_grasp_encoder_forward.1} parent=79 // pred_check_branch
          %549 = sbr.rel (%p547) target = $region88
        $region87: #{pc_conditioned_grasp_encoder_forward.1} parent=79 // pred_region
          %p550 = scmp.lt.s32.totalorder %s32, 1
          %s551 = scalar_select %p550, %s32, 1
          %s552 = smul.addr %s551, 2
          %s553 = scalar_lea.vmem %s1, %s552
        $region88: #{pc_conditioned_grasp_encoder_forward.1} parent=79 // pred_fallthru
          _
      $region80: #{pc_conditioned_grasp_encoder_forward.1} parent=5 // pred_fallthru
        _
      %p554 = scmp.le.s32.totalorder 1, %s32
      %p555 = scmp.lt.s32.totalorder %s32, 3
      %p556 = pnand %p554, %p555
      %p557 = pneg %p556
      // Predicated region
      $region89: #{pc_conditioned_grasp_encoder_forward.1} parent=5 // pred_check
        _
      $region90: #{pc_conditioned_grasp_encoder_forward.1} parent=5 // pred_check_branch
        %559 = sbr.rel (%p556) target = $region92
      $region91: #{pc_conditioned_grasp_encoder_forward.1} parent=5 // pred_region
        %s560 = ssub.s32 %s32, 1
        %p561 = scmp.lt.s32.totalorder %s37, 1
        %s562 = scalar_select %p561, %s37, 1
        %s563 = smul.addr %s562, 16
        %s564 = smul.addr %s563, 8
        %s565 = scalar_lea.vmem %s0, %s564
        %p566 = pneg %p58
        %p567 = pneg %p55
        %p568 = scmp.lt.s32.totalorder %s37, 1
        %s569 = scalar_select %p568, %s37, 1
        %s570 = smul.addr %s569, 2
        %s571 = scalar_lea.vmem %s1, %s570
        %p572 = pneg %p84
        %p573 = pneg %p81
        %p574 = pneg %p105
        %p575 = pneg %p102
        %p576 = pneg %p126
        %p577 = pneg %p123
        %p578 = pneg %p147
        %p579 = pneg %p144
        %p580 = pneg %p168
        %p581 = pneg %p165
        %p582 = pneg %p189
        %p583 = pneg %p186
        %p584 = pneg %p210
        %p585 = pneg %p207
        %p586 = pneg %p231
        %p587 = pneg %p228
        %p588 = pneg %p252
        %p589 = pneg %p249
        %p590 = pneg %p273
        %p591 = pneg %p270
        %p592 = pneg %p294
        %p593 = pneg %p291
        %p594 = pneg %p315
        %p595 = pneg %p312
        %p596 = pneg %p336
        %p597 = pneg %p333
        %p598 = pneg %p357
        %p599 = pneg %p354
        %p600 = pneg %p378
        %p601 = pneg %p375
        %p602 = pneg %p399
        %p603 = pneg %p396
        %p604 = pneg %p420
        %p605 = pneg %p417
        %p606 = pneg %p446
        %p607 = pneg %p443
        %s608 = sand.u32 %s433, 1
        %s609 = scalar_lea.sflag [#allocation3], %s608
        %s610 = sand.u32 %s433, 1
        %s611 = smul.addr %s610, 2
        %s612 = scalar_lea.vmem [#allocation2], %s611
        %p613 = pneg %p472
        %p614 = pneg %p469
        %s615 = sand.u32 %s459, 1
        %s616 = scalar_lea.sflag [#allocation5], %s615
        %s617 = sand.u32 %s459, 1
        %s618 = smul.addr %s617, 2
        %s619 = scalar_lea.vmem [#allocation4], %s618
        %p620 = scmp.lt.s32.totalorder %s37, 1
        %s621 = scalar_select %p620, %s37, 1
        %s622 = smul.addr %s621, 16
        %s623 = smul.addr %s622, 8
        %s624 = scalar_lea.vmem %s0, %s623
        %p625 = scmp.lt.s32.totalorder %s37, 1
        %s626 = scalar_select %p625, %s37, 1
        %s627 = smul.addr %s626, 2
        %s628 = scalar_lea.vmem %s1, %s627
        %v629 = vld [vmem:[%s624] sm:$0xff]
        %v630 = vld [vmem:[%s624 + $0x8] sm:$0xff]
        %v631 = vld [vmem:[%s624 + $0x10] sm:$0xff]
        %v632 = vld [vmem:[%s624 + $0x18] sm:$0xff]
        %v633 = vld [vmem:[%s624 + $0x20] sm:$0xff]
        %v634 = vld [vmem:[%s624 + $0x28] sm:$0xff]
        %v635 = vld [vmem:[%s624 + $0x30] sm:$0xff]
        %v636 = vld [vmem:[%s624 + $0x38] sm:$0xff]
        %v637 = vld [vmem:[%s624 + $0x40] sm:$0xff]
        %v638 = vld [vmem:[%s624 + $0x48] sm:$0xff]
        %v639 = vld [vmem:[%s624 + $0x50] sm:$0xff]
        %v640 = vld [vmem:[%s624 + $0x58] sm:$0xff]
        %v641 = vld [vmem:[%s624 + $0x60] sm:$0xff]
        %v642 = vld [vmem:[%s624 + $0x68] sm:$0xff]
        %v643 = vld [vmem:[%s624 + $0x70] sm:$0xff]
        %v644 = vld [vmem:[%s624 + $0x78] sm:$0xff]
        %v645 = vld [vmem:[%s2] sm:$0x7]
        %647 = vset.pattern.permute.xlu0 0
        %648 = vperm.xlu0 %647, %v629
        %v649 = vpop.permute.xlu0 %648
        %652 = vset.pattern.permute.xlu0 0
        %653 = vperm.xlu0 %652, %v630
        %v654 = vpop.permute.xlu0 %653
        %657 = vset.pattern.permute.xlu0 0
        %658 = vperm.xlu0 %657, %v631
        %v659 = vpop.permute.xlu0 %658
        %662 = vset.pattern.permute.xlu0 0
        %663 = vperm.xlu0 %662, %v632
        %v664 = vpop.permute.xlu0 %663
        %667 = vset.pattern.permute.xlu0 0
        %668 = vperm.xlu0 %667, %v633
        %v669 = vpop.permute.xlu0 %668
        %672 = vset.pattern.permute.xlu0 0
        %673 = vperm.xlu0 %672, %v634
        %v674 = vpop.permute.xlu0 %673
        %677 = vset.pattern.permute.xlu0 0
        %678 = vperm.xlu0 %677, %v635
        %v679 = vpop.permute.xlu0 %678
        %682 = vset.pattern.permute.xlu0 0
        %683 = vperm.xlu0 %682, %v636
        %v684 = vpop.permute.xlu0 %683
        %687 = vset.pattern.permute.xlu0 0
        %688 = vperm.xlu0 %687, %v637
        %v689 = vpop.permute.xlu0 %688
        %692 = vset.pattern.permute.xlu0 0
        %693 = vperm.xlu0 %692, %v638
        %v694 = vpop.permute.xlu0 %693
        %697 = vset.pattern.permute.xlu0 0
        %698 = vperm.xlu0 %697, %v639
        %v699 = vpop.permute.xlu0 %698
        %702 = vset.pattern.permute.xlu0 0
        %703 = vperm.xlu0 %702, %v640
        %v704 = vpop.permute.xlu0 %703
        %707 = vset.pattern.permute.xlu0 0
        %708 = vperm.xlu0 %707, %v641
        %v709 = vpop.permute.xlu0 %708
        %712 = vset.pattern.permute.xlu0 0
        %713 = vperm.xlu0 %712, %v642
        %v714 = vpop.permute.xlu0 %713
        %717 = vset.pattern.permute.xlu0 0
        %718 = vperm.xlu0 %717, %v643
        %v719 = vpop.permute.xlu0 %718
        %722 = vset.pattern.permute.xlu0 0
        %723 = vperm.xlu0 %722, %v644
        %v724 = vpop.permute.xlu0 %723
        %v726 = vlaneseq
        %v727 = vshrl.u32 %v726, 7
        %v728 = vsub.s32 0, %v727
        %v729 = vrot.slane %v645, %v728
        %v730 = vmul.f32 %v649, %v729
        %v731 = vmul.f32 %v654, %v729
        %v732 = vmul.f32 %v659, %v729
        %v733 = vmul.f32 %v664, %v729
        %v734 = vmul.f32 %v669, %v729
        %v735 = vmul.f32 %v674, %v729
        %v736 = vmul.f32 %v679, %v729
        %v737 = vmul.f32 %v684, %v729
        %v738 = vmul.f32 %v689, %v729
        %v739 = vmul.f32 %v694, %v729
        %v740 = vmul.f32 %v699, %v729
        %v741 = vmul.f32 %v704, %v729
        %v742 = vmul.f32 %v709, %v729
        %v743 = vmul.f32 %v714, %v729
        %v744 = vmul.f32 %v719, %v729
        %v745 = vmul.f32 %v724, %v729
        %746 = vset.pattern.permute.xlu0 1
        %747 = vperm.xlu0 %746, %v629
        %v748 = vpop.permute.xlu0 %747
        %750 = vset.pattern.permute.xlu0 1
        %751 = vperm.xlu0 %750, %v630
        %v752 = vpop.permute.xlu0 %751
        %754 = vset.pattern.permute.xlu0 1
        %755 = vperm.xlu0 %754, %v631
        %v756 = vpop.permute.xlu0 %755
        %758 = vset.pattern.permute.xlu0 1
        %759 = vperm.xlu0 %758, %v632
        %v760 = vpop.permute.xlu0 %759
        %762 = vset.pattern.permute.xlu0 1
        %763 = vperm.xlu0 %762, %v633
        %v764 = vpop.permute.xlu0 %763
        %766 = vset.pattern.permute.xlu0 1
        %767 = vperm.xlu0 %766, %v634
        %v768 = vpop.permute.xlu0 %767
        %770 = vset.pattern.permute.xlu0 1
        %771 = vperm.xlu0 %770, %v635
        %v772 = vpop.permute.xlu0 %771
        %774 = vset.pattern.permute.xlu0 1
        %775 = vperm.xlu0 %774, %v636
        %v776 = vpop.permute.xlu0 %775
        %778 = vset.pattern.permute.xlu0 1
        %779 = vperm.xlu0 %778, %v637
        %v780 = vpop.permute.xlu0 %779
        %782 = vset.pattern.permute.xlu0 1
        %783 = vperm.xlu0 %782, %v638
        %v784 = vpop.permute.xlu0 %783
        %786 = vset.pattern.permute.xlu0 1
        %787 = vperm.xlu0 %786, %v639
        %v788 = vpop.permute.xlu0 %787
        %790 = vset.pattern.permute.xlu0 1
        %791 = vperm.xlu0 %790, %v640
        %v792 = vpop.permute.xlu0 %791
        %794 = vset.pattern.permute.xlu0 1
        %795 = vperm.xlu0 %794, %v641
        %v796 = vpop.permute.xlu0 %795
        %798 = vset.pattern.permute.xlu0 1
        %799 = vperm.xlu0 %798, %v642
        %v800 = vpop.permute.xlu0 %799
        %802 = vset.pattern.permute.xlu0 1
        %803 = vperm.xlu0 %802, %v643
        %v804 = vpop.permute.xlu0 %803
        %806 = vset.pattern.permute.xlu0 1
        %807 = vperm.xlu0 %806, %v644
        %v808 = vpop.permute.xlu0 %807
        %v810 = vlaneseq
        %v811 = vshrl.u32 %v810, 7
        %v812 = vsub.s32 1, %v811
        %v813 = vrot.slane %v645, %v812
        %v814 = vmul.f32 %v748, %v813
        %v815 = vmul.f32 %v752, %v813
        %v816 = vmul.f32 %v756, %v813
        %v817 = vmul.f32 %v760, %v813
        %v818 = vmul.f32 %v764, %v813
        %v819 = vmul.f32 %v768, %v813
        %v820 = vmul.f32 %v772, %v813
        %v821 = vmul.f32 %v776, %v813
        %v822 = vmul.f32 %v780, %v813
        %v823 = vmul.f32 %v784, %v813
        %v824 = vmul.f32 %v788, %v813
        %v825 = vmul.f32 %v792, %v813
        %v826 = vmul.f32 %v796, %v813
        %v827 = vmul.f32 %v800, %v813
        %v828 = vmul.f32 %v804, %v813
        %v829 = vmul.f32 %v808, %v813
        %v830 = vadd.f32 %v730, %v814
        %v831 = vadd.f32 %v731, %v815
        %v832 = vadd.f32 %v732, %v816
        %v833 = vadd.f32 %v733, %v817
        %v834 = vadd.f32 %v734, %v818
        %v835 = vadd.f32 %v735, %v819
        %v836 = vadd.f32 %v736, %v820
        %v837 = vadd.f32 %v737, %v821
        %v838 = vadd.f32 %v738, %v822
        %v839 = vadd.f32 %v739, %v823
        %v840 = vadd.f32 %v740, %v824
        %v841 = vadd.f32 %v741, %v825
        %v842 = vadd.f32 %v742, %v826
        %v843 = vadd.f32 %v743, %v827
        %v844 = vadd.f32 %v744, %v828
        %v845 = vadd.f32 %v745, %v829
        %846 = vset.pattern.permute.xlu0 2
        %847 = vperm.xlu0 %846, %v629
        %v848 = vpop.permute.xlu0 %847
        %850 = vset.pattern.permute.xlu0 2
        %851 = vperm.xlu0 %850, %v630
        %v852 = vpop.permute.xlu0 %851
        %854 = vset.pattern.permute.xlu0 2
        %855 = vperm.xlu0 %854, %v631
        %v856 = vpop.permute.xlu0 %855
        %858 = vset.pattern.permute.xlu0 2
        %859 = vperm.xlu0 %858, %v632
        %v860 = vpop.permute.xlu0 %859
        %862 = vset.pattern.permute.xlu0 2
        %863 = vperm.xlu0 %862, %v633
        %v864 = vpop.permute.xlu0 %863
        %866 = vset.pattern.permute.xlu0 2
        %867 = vperm.xlu0 %866, %v634
        %v868 = vpop.permute.xlu0 %867
        %870 = vset.pattern.permute.xlu0 2
        %871 = vperm.xlu0 %870, %v635
        %v872 = vpop.permute.xlu0 %871
        %874 = vset.pattern.permute.xlu0 2
        %875 = vperm.xlu0 %874, %v636
        %v876 = vpop.permute.xlu0 %875
        %878 = vset.pattern.permute.xlu0 2
        %879 = vperm.xlu0 %878, %v637
        %v880 = vpop.permute.xlu0 %879
        %882 = vset.pattern.permute.xlu0 2
        %883 = vperm.xlu0 %882, %v638
        %v884 = vpop.permute.xlu0 %883
        %886 = vset.pattern.permute.xlu0 2
        %887 = vperm.xlu0 %886, %v639
        %v888 = vpop.permute.xlu0 %887
        %890 = vset.pattern.permute.xlu0 2
        %891 = vperm.xlu0 %890, %v640
        %v892 = vpop.permute.xlu0 %891
        %894 = vset.pattern.permute.xlu0 2
        %895 = vperm.xlu0 %894, %v641
        %v896 = vpop.permute.xlu0 %895
        %898 = vset.pattern.permute.xlu0 2
        %899 = vperm.xlu0 %898, %v642
        %v900 = vpop.permute.xlu0 %899
        %902 = vset.pattern.permute.xlu0 2
        %903 = vperm.xlu0 %902, %v643
        %v904 = vpop.permute.xlu0 %903
        %906 = vset.pattern.permute.xlu0 2
        %907 = vperm.xlu0 %906, %v644
        %v908 = vpop.permute.xlu0 %907
        %v910 = vlaneseq
        %v911 = vshrl.u32 %v910, 7
        %v912 = vsub.s32 2, %v911
        %v913 = vrot.slane %v645, %v912
        %v914 = vmul.f32 %v848, %v913
        %v915 = vmul.f32 %v852, %v913
        %v916 = vmul.f32 %v856, %v913
        %v917 = vmul.f32 %v860, %v913
        %v918 = vmul.f32 %v864, %v913
        %v919 = vmul.f32 %v868, %v913
        %v920 = vmul.f32 %v872, %v913
        %v921 = vmul.f32 %v876, %v913
        %v922 = vmul.f32 %v880, %v913
        %v923 = vmul.f32 %v884, %v913
        %v924 = vmul.f32 %v888, %v913
        %v925 = vmul.f32 %v892, %v913
        %v926 = vmul.f32 %v896, %v913
        %v927 = vmul.f32 %v900, %v913
        %v928 = vmul.f32 %v904, %v913
        %v929 = vmul.f32 %v908, %v913
        %v930 = vadd.f32 %v830, %v914
        %v931 = vadd.f32 %v831, %v915
        %v932 = vadd.f32 %v832, %v916
        %v933 = vadd.f32 %v833, %v917
        %v934 = vadd.f32 %v834, %v918
        %v935 = vadd.f32 %v835, %v919
        %v936 = vadd.f32 %v836, %v920
        %v937 = vadd.f32 %v837, %v921
        %v938 = vadd.f32 %v838, %v922
        %v939 = vadd.f32 %v839, %v923
        %v940 = vadd.f32 %v840, %v924
        %v941 = vadd.f32 %v841, %v925
        %v942 = vadd.f32 %v842, %v926
        %v943 = vadd.f32 %v843, %v927
        %v944 = vadd.f32 %v844, %v928
        %v945 = vadd.f32 %v845, %v929
        %v946 = vld [vmem:[%s3] sm:$0x1]
        %v948 = vlaneseq
        %v949 = vshrl.u32 %v948, 7
        %v950 = vsub.s32 0, %v949
        %v951 = vrot.slane %v946, %v950
        %v953 = vadd.f32 %v930, %v951
        %v954 = vadd.f32 %v931, %v951
        %v955 = vadd.f32 %v932, %v951
        %v956 = vadd.f32 %v933, %v951
        %v957 = vadd.f32 %v934, %v951
        %v958 = vadd.f32 %v935, %v951
        %v959 = vadd.f32 %v936, %v951
        %v960 = vadd.f32 %v937, %v951
        %v961 = vadd.f32 %v938, %v951
        %v962 = vadd.f32 %v939, %v951
        %v963 = vadd.f32 %v940, %v951
        %v964 = vadd.f32 %v941, %v951
        %v965 = vadd.f32 %v942, %v951
        %v966 = vadd.f32 %v943, %v951
        %v967 = vadd.f32 %v944, %v951
        %v968 = vadd.f32 %v945, %v951
        %v969 = vmax.f32 %v953, 0.0
        %v970 = vmax.f32 %v954, 0.0
        %v971 = vmax.f32 %v955, 0.0
        %v972 = vmax.f32 %v956, 0.0
        %v973 = vmax.f32 %v957, 0.0
        %v974 = vmax.f32 %v958, 0.0
        %v975 = vmax.f32 %v959, 0.0
        %v976 = vmax.f32 %v960, 0.0
        %v977 = vmax.f32 %v961, 0.0
        %v978 = vmax.f32 %v962, 0.0
        %v979 = vmax.f32 %v963, 0.0
        %v980 = vmax.f32 %v964, 0.0
        %v981 = vmax.f32 %v965, 0.0
        %v982 = vmax.f32 %v966, 0.0
        %v983 = vmax.f32 %v967, 0.0
        %v984 = vmax.f32 %v968, 0.0
        %v985 = vld [vmem:[%s4] sm:$0xff]
        %v986 = vld [vmem:[%s4 + $0x8] sm:$0xff]
        %v987 = vld [vmem:[%s4 + $0x10] sm:$0xff]
        %v988 = vld [vmem:[%s4 + $0x18] sm:$0xff]
        %v989 = vld [vmem:[%s4 + $0x20] sm:$0xff]
        %v990 = vld [vmem:[%s4 + $0x28] sm:$0xff]
        %v991 = vld [vmem:[%s4 + $0x30] sm:$0xff]
        %v992 = vld [vmem:[%s4 + $0x38] sm:$0xff]
        %v993 = vld [vmem:[%s5] sm:$0x1]
        %v995 = vlaneseq
        %v996 = vshrl.u32 %v995, 7
        %v997 = vsub.s32 0, %v996
        %v998 = vrot.slane %v993, %v997
        %vm1000 = vcmask 523264
        %v1002 = vsel %vm1000, %v969, 0
        %v1005 = vsel %vm1000, %v970, 0
        %v1008 = vsel %vm1000, %v971, 0
        %v1011 = vsel %vm1000, %v972, 0
        %v1014 = vsel %vm1000, %v973, 0
        %v1017 = vsel %vm1000, %v974, 0
        %v1020 = vsel %vm1000, %v975, 0
        %v1023 = vsel %vm1000, %v976, 0
        %v1026 = vsel %vm1000, %v977, 0
        %v1029 = vsel %vm1000, %v978, 0
        %v1032 = vsel %vm1000, %v979, 0
        %v1035 = vsel %vm1000, %v980, 0
        %v1038 = vsel %vm1000, %v981, 0
        %v1041 = vsel %vm1000, %v982, 0
        %v1044 = vsel %vm1000, %v983, 0
        %v1047 = vsel %vm1000, %v984, 0
        %1049 = vmatprep.subr.mxu0 0.0
        %1050 = vmatpush1.msra.mxu0 0.0
        %1051 = vmatprep.subr.mxu0 0.0
        %1052 = vmatpush1.msra.mxu0 0.0
        %1053 = vmatprep.subr.mxu0 0.0
        %1054 = vmatpush1.msra.mxu0 0.0
        %1055 = vmatprep.subr.mxu0 0.0
        %1056 = vmatpush1.msra.mxu0 0.0
        %1057 = vmatprep.subr.mxu0 0.0
        %1058 = vmatpush1.msra.mxu0 0.0
        %1059 = vmatprep.subr.mxu0 0.0
        %1060 = vmatpush1.msra.mxu0 0.0
        %1061 = vmatprep.subr.mxu0 0.0
        %1062 = vmatpush1.msra.mxu0 0.0
        %1063 = vmatprep.subr.mxu0 0.0
        %1064 = vmatpush1.msra.mxu0 0.0
        %1065 = vmatprep.subr.mxu0 0.0
        %1066 = vmatpush1.msra.mxu0 %v992
        %1067 = vmatprep.subr.mxu0 0.0
        %1068 = vmatpush1.msra.mxu0 %v991
        %1069 = vmatprep.subr.mxu0 0.0
        %1070 = vmatpush1.msra.mxu0 %v990
        %1071 = vmatprep.subr.mxu0 0.0
        %1072 = vmatpush1.msra.mxu0 %v989
        %1073 = vmatprep.subr.mxu0 0.0
        %1074 = vmatpush1.msra.mxu0 %v988
        %1075 = vmatprep.subr.mxu0 0.0
        %1076 = vmatpush1.msra.mxu0 %v987
        %1077 = vmatprep.subr.mxu0 0.0
        %1078 = vmatpush1.msra.mxu0 %v986
        %1079 = vmatprep.subr.mxu0 0.0
        %1080 = vmatpush1.msra.mxu0 %v985
        %1081 = vmatprep.subr.mxu0 0.0
        %1082 = vmatpush2.msra.mxu0 0.0
        %1083 = vmatprep.subr.mxu0 0.0
        %1084 = vmatpush2.msra.mxu0 0.0
        %1085 = vmatprep.subr.mxu0 0.0
        %1086 = vmatpush2.msra.mxu0 0.0
        %1087 = vmatprep.subr.mxu0 0.0
        %1088 = vmatpush2.msra.mxu0 0.0
        %1089 = vmatprep.subr.mxu0 0.0
        %1090 = vmatpush2.msra.mxu0 0.0
        %1091 = vmatprep.subr.mxu0 0.0
        %1092 = vmatpush2.msra.mxu0 0.0
        %1093 = vmatprep.subr.mxu0 0.0
        %1094 = vmatpush2.msra.mxu0 0.0
        %1095 = vmatprep.subr.mxu0 0.0
        %1096 = vmatpush2.msra.mxu0 0.0
        %1097 = vmatprep.subr.mxu0 0.0
        %1098 = vmatpush2.msra.mxu0 0.0
        %1099 = vmatprep.subr.mxu0 0.0
        %1100 = vmatpush2.msra.mxu0 0.0
        %1101 = vmatprep.subr.mxu0 0.0
        %1102 = vmatpush2.msra.mxu0 0.0
        %1103 = vmatprep.subr.mxu0 0.0
        %1104 = vmatpush2.msra.mxu0 0.0
        %1105 = vmatprep.subr.mxu0 0.0
        %1106 = vmatpush2.msra.mxu0 0.0
        %1107 = vmatprep.subr.mxu0 0.0
        %1108 = vmatpush2.msra.mxu0 0.0
        %1109 = vmatprep.subr.mxu0 0.0
        %1110 = vmatpush2.msra.mxu0 0.0
        %1111 = vmatprep.subr.mxu0 0.0
        %1112 = vmatpush2.msra.mxu0 0.0
        %1113 = vmatprep.mubr.f32.mxu0 0.0
        %1114 = vmatmul.mubr.f32.gmra.mxu0 %v1002
        %v1115 = vpop.f32.mrf.mxu0
        %v1116 = vadd.f32 %v998, %v1115
        %v1117 = vpop.f32.mrf.mxu0
        %1118 = vmatprep.mubr.f32.mxu0 0.0
        %1119 = vmatmul.mubr.f32.gmra.mxu0 %v1005
        %v1120 = vpop.f32.mrf.mxu0
        %v1121 = vadd.f32 %v998, %v1120
        %v1122 = vpop.f32.mrf.mxu0
        %1123 = vmatprep.mubr.f32.mxu0 0.0
        %1124 = vmatmul.mubr.f32.gmra.mxu0 %v1008
        %v1125 = vpop.f32.mrf.mxu0
        %v1126 = vadd.f32 %v998, %v1125
        %v1127 = vpop.f32.mrf.mxu0
        %1128 = vmatprep.mubr.f32.mxu0 0.0
        %1129 = vmatmul.mubr.f32.gmra.mxu0 %v1011
        %v1130 = vpop.f32.mrf.mxu0
        %v1131 = vadd.f32 %v998, %v1130
        %v1132 = vpop.f32.mrf.mxu0
        %1133 = vmatprep.mubr.f32.mxu0 0.0
        %1134 = vmatmul.mubr.f32.gmra.mxu0 %v1014
        %v1135 = vpop.f32.mrf.mxu0
        %v1136 = vadd.f32 %v998, %v1135
        %v1137 = vpop.f32.mrf.mxu0
        %1138 = vmatprep.mubr.f32.mxu0 0.0
        %1139 = vmatmul.mubr.f32.gmra.mxu0 %v1017
        %v1140 = vpop.f32.mrf.mxu0
        %v1141 = vadd.f32 %v998, %v1140
        %v1142 = vpop.f32.mrf.mxu0
        %1143 = vmatprep.mubr.f32.mxu0 0.0
        %1144 = vmatmul.mubr.f32.gmra.mxu0 %v1020
        %v1145 = vpop.f32.mrf.mxu0
        %v1146 = vadd.f32 %v998, %v1145
        %v1147 = vpop.f32.mrf.mxu0
        %1148 = vmatprep.mubr.f32.mxu0 0.0
        %1149 = vmatmul.mubr.f32.gmra.mxu0 %v1023
        %v1150 = vpop.f32.mrf.mxu0
        %v1151 = vadd.f32 %v998, %v1150
        %v1152 = vpop.f32.mrf.mxu0
        %1153 = vmatprep.mubr.f32.mxu0 0.0
        %1154 = vmatmul.mubr.f32.gmra.mxu0 %v1026
        %v1155 = vpop.f32.mrf.mxu0
        %v1156 = vadd.f32 %v998, %v1155
        %v1157 = vpop.f32.mrf.mxu0
        %1158 = vmatprep.mubr.f32.mxu0 0.0
        %1159 = vmatmul.mubr.f32.gmra.mxu0 %v1029
        %v1160 = vpop.f32.mrf.mxu0
        %v1161 = vadd.f32 %v998, %v1160
        %v1162 = vpop.f32.mrf.mxu0
        %1163 = vmatprep.mubr.f32.mxu0 0.0
        %1164 = vmatmul.mubr.f32.gmra.mxu0 %v1032
        %v1165 = vpop.f32.mrf.mxu0
        %v1166 = vadd.f32 %v998, %v1165
        %v1167 = vpop.f32.mrf.mxu0
        %1168 = vmatprep.mubr.f32.mxu0 0.0
        %1169 = vmatmul.mubr.f32.gmra.mxu0 %v1035
        %v1170 = vpop.f32.mrf.mxu0
        %v1171 = vadd.f32 %v998, %v1170
        %v1172 = vpop.f32.mrf.mxu0
        %1173 = vmatprep.mubr.f32.mxu0 0.0
        %1174 = vmatmul.mubr.f32.gmra.mxu0 %v1038
        %v1175 = vpop.f32.mrf.mxu0
        %v1176 = vadd.f32 %v998, %v1175
        %v1177 = vpop.f32.mrf.mxu0
        %1178 = vmatprep.mubr.f32.mxu0 0.0
        %1179 = vmatmul.mubr.f32.gmra.mxu0 %v1041
        %v1180 = vpop.f32.mrf.mxu0
        %v1181 = vadd.f32 %v998, %v1180
        %v1182 = vpop.f32.mrf.mxu0
        %1183 = vmatprep.mubr.f32.mxu0 0.0
        %1184 = vmatmul.mubr.f32.gmra.mxu0 %v1044
        %v1185 = vpop.f32.mrf.mxu0
        %v1186 = vadd.f32 %v998, %v1185
        %v1187 = vpop.f32.mrf.mxu0
        %1188 = vmatprep.mubr.f32.mxu0 0.0
        %1189 = vmatmul.mubr.f32.gmra.mxu0 %v1047
        %v1190 = vpop.f32.mrf.mxu0
        %v1191 = vadd.f32 %v998, %v1190
        %v1192 = vpop.f32.mrf.mxu0
        %1193 = vdwg.mxu0
        %v1194 = vmax.f32 %v1116, 0.0
        %v1195 = vmax.f32 %v1121, 0.0
        %v1196 = vmax.f32 %v1126, 0.0
        %v1197 = vmax.f32 %v1131, 0.0
        %v1198 = vmax.f32 %v1136, 0.0
        %v1199 = vmax.f32 %v1141, 0.0
        %v1200 = vmax.f32 %v1146, 0.0
        %v1201 = vmax.f32 %v1151, 0.0
        %v1202 = vmax.f32 %v1156, 0.0
        %v1203 = vmax.f32 %v1161, 0.0
        %v1204 = vmax.f32 %v1166, 0.0
        %v1205 = vmax.f32 %v1171, 0.0
        %v1206 = vmax.f32 %v1176, 0.0
        %v1207 = vmax.f32 %v1181, 0.0
        %v1208 = vmax.f32 %v1186, 0.0
        %v1209 = vmax.f32 %v1191, 0.0
        %v1210 = vmax.f32 %v1194, %v1198
        %v1211 = vmax.f32 %v1195, %v1199
        %v1212 = vmax.f32 %v1196, %v1200
        %v1213 = vmax.f32 %v1197, %v1201
        %v1214 = vmax.f32 %v1210, %v1202
        %v1215 = vmax.f32 %v1211, %v1203
        %v1216 = vmax.f32 %v1212, %v1204
        %v1217 = vmax.f32 %v1213, %v1205
        %v1218 = vmax.f32 %v1214, %v1206
        %v1219 = vmax.f32 %v1215, %v1207
        %v1220 = vmax.f32 %v1216, %v1208
        %v1221 = vmax.f32 %v1217, %v1209
        %v1222 = vmax.f32 %v1218, %v1219
        %v1223 = vmax.f32 %v1220, %v1221
        %v1224 = vmax.f32 %v1222, %v1223
        %v1225 = vrot.slane %v1224, 4
        %v1226 = vmax.f32 %v1224, %v1225
        %v1227 = vrot.slane %v1226, 2
        %v1228 = vmax.f32 %v1226, %v1227
        %v1229 = vrot.slane %v1228, 1
        %v1230 = vmax.f32 %v1228, %v1229
        %v1231 = vld [vmem:[%s6] sm:$0xff]
        %v1232 = vld [vmem:[%s6 + $0x8] sm:$0xff]
        %v1233 = vld [vmem:[%s6 + $0x10] sm:$0xff]
        %v1234 = vld [vmem:[%s6 + $0x18] sm:$0xff]
        %v1235 = vld [vmem:[%s6 + $0x20] sm:$0xff]
        %v1236 = vld [vmem:[%s6 + $0x28] sm:$0xff]
        %v1237 = vld [vmem:[%s6 + $0x30] sm:$0xff]
        %v1238 = vld [vmem:[%s6 + $0x38] sm:$0xff]
        %v1239 = vld [vmem:[%s6 + $0x40] sm:$0xff]
        %v1240 = vld [vmem:[%s6 + $0x48] sm:$0xff]
        %v1241 = vld [vmem:[%s6 + $0x50] sm:$0xff]
        %v1242 = vld [vmem:[%s6 + $0x58] sm:$0xff]
        %v1243 = vld [vmem:[%s6 + $0x60] sm:$0xff]
        %v1244 = vld [vmem:[%s6 + $0x68] sm:$0xff]
        %v1245 = vld [vmem:[%s6 + $0x70] sm:$0xff]
        %v1246 = vld [vmem:[%s6 + $0x78] sm:$0xff]
        %v1247 = vld [vmem:[%s7] sm:$0x1]
        %1248 = vmatprep.subr.mxu0 0.0
        %1249 = vmatpush1.msra.mxu0 %v1246
        %1250 = vmatprep.subr.mxu0 0.0
        %1251 = vmatpush1.msra.mxu0 %v1245
        %1252 = vmatprep.subr.mxu0 0.0
        %1253 = vmatpush1.msra.mxu0 %v1244
        %1254 = vmatprep.subr.mxu0 0.0
        %1255 = vmatpush1.msra.mxu0 %v1243
        %1256 = vmatprep.subr.mxu0 0.0
        %1257 = vmatpush1.msra.mxu0 %v1242
        %1258 = vmatprep.subr.mxu0 0.0
        %1259 = vmatpush1.msra.mxu0 %v1241
        %1260 = vmatprep.subr.mxu0 0.0
        %1261 = vmatpush1.msra.mxu0 %v1240
        %1262 = vmatprep.subr.mxu0 0.0
        %1263 = vmatpush1.msra.mxu0 %v1239
        %1264 = vmatprep.subr.mxu0 0.0
        %1265 = vmatpush1.msra.mxu0 %v1238
        %1266 = vmatprep.subr.mxu0 0.0
        %1267 = vmatpush1.msra.mxu0 %v1237
        %1268 = vmatprep.subr.mxu0 0.0
        %1269 = vmatpush1.msra.mxu0 %v1236
        %1270 = vmatprep.subr.mxu0 0.0
        %1271 = vmatpush1.msra.mxu0 %v1235
        %1272 = vmatprep.subr.mxu0 0.0
        %1273 = vmatpush1.msra.mxu0 %v1234
        %1274 = vmatprep.subr.mxu0 0.0
        %1275 = vmatpush1.msra.mxu0 %v1233
        %1276 = vmatprep.subr.mxu0 0.0
        %1277 = vmatpush1.msra.mxu0 %v1232
        %1278 = vmatprep.subr.mxu0 0.0
        %1279 = vmatpush1.msra.mxu0 %v1231
        %1280 = vmatprep.subr.mxu0 0.0
        %1281 = vmatpush2.msra.mxu0 0.0
        %1282 = vmatprep.subr.mxu0 0.0
        %1283 = vmatpush2.msra.mxu0 0.0
        %1284 = vmatprep.subr.mxu0 0.0
        %1285 = vmatpush2.msra.mxu0 0.0
        %1286 = vmatprep.subr.mxu0 0.0
        %1287 = vmatpush2.msra.mxu0 0.0
        %1288 = vmatprep.subr.mxu0 0.0
        %1289 = vmatpush2.msra.mxu0 0.0
        %1290 = vmatprep.subr.mxu0 0.0
        %1291 = vmatpush2.msra.mxu0 0.0
        %1292 = vmatprep.subr.mxu0 0.0
        %1293 = vmatpush2.msra.mxu0 0.0
        %1294 = vmatprep.subr.mxu0 0.0
        %1295 = vmatpush2.msra.mxu0 0.0
        %1296 = vmatprep.subr.mxu0 0.0
        %1297 = vmatpush2.msra.mxu0 0.0
        %1298 = vmatprep.subr.mxu0 0.0
        %1299 = vmatpush2.msra.mxu0 0.0
        %1300 = vmatprep.subr.mxu0 0.0
        %1301 = vmatpush2.msra.mxu0 0.0
        %1302 = vmatprep.subr.mxu0 0.0
        %1303 = vmatpush2.msra.mxu0 0.0
        %1304 = vmatprep.subr.mxu0 0.0
        %1305 = vmatpush2.msra.mxu0 0.0
        %1306 = vmatprep.subr.mxu0 0.0
        %1307 = vmatpush2.msra.mxu0 0.0
        %1308 = vmatprep.subr.mxu0 0.0
        %1309 = vmatpush2.msra.mxu0 0.0
        %1310 = vmatprep.subr.mxu0 0.0
        %1311 = vmatpush2.msra.mxu0 0.0
        %1312 = vmatprep.mubr.f32.mxu0 0.0
        %1313 = vmatmul.mubr.f32.gmra.mxu0 %v1230
        %v1314 = vpop.f32.mrf.mxu0
        %v1315 = vadd.f32 %v1247, %v1314
        %v1316 = vpop.f32.mrf.mxu0
        %1317 = vdwg.mxu0
        %v1318 = vld [vmem:[%s628] sm:$0x3]
        %v1319 = vld [vmem:[%s8] sm:$0x7f]
        %v1320 = vld [vmem:[%s9] sm:$0x1]
        %v1322 = vlaneseq
        %v1323 = vshrl.u32 %v1322, 7
        %v1324 = vsub.s32 0, %v1323
        %v1325 = vrot.slane %v1320, %v1324
        %vm1327 = vcmask 56320
        %v1329 = vsel %vm1327, %v1318, 0
        %vm1331 = vcmask 1046528
        %v1333 = vsel %vm1331, %v1319, 0
        %1335 = vmatprep.subr.mxu0 0.0
        %1336 = vmatpush1.msra.mxu0 0.0
        %1337 = vmatprep.subr.mxu0 0.0
        %1338 = vmatpush1.msra.mxu0 0.0
        %1339 = vmatprep.subr.mxu0 0.0
        %1340 = vmatpush1.msra.mxu0 0.0
        %1341 = vmatprep.subr.mxu0 0.0
        %1342 = vmatpush1.msra.mxu0 0.0
        %1343 = vmatprep.subr.mxu0 0.0
        %1344 = vmatpush1.msra.mxu0 0.0
        %1345 = vmatprep.subr.mxu0 0.0
        %1346 = vmatpush1.msra.mxu0 0.0
        %1347 = vmatprep.subr.mxu0 0.0
        %1348 = vmatpush1.msra.mxu0 0.0
        %1349 = vmatprep.subr.mxu0 0.0
        %1350 = vmatpush1.msra.mxu0 0.0
        %1351 = vmatprep.subr.mxu0 0.0
        %1352 = vmatpush1.msra.mxu0 0.0
        %1353 = vmatprep.subr.mxu0 0.0
        %1354 = vmatpush1.msra.mxu0 0.0
        %1355 = vmatprep.subr.mxu0 0.0
        %1356 = vmatpush1.msra.mxu0 0.0
        %1357 = vmatprep.subr.mxu0 0.0
        %1358 = vmatpush1.msra.mxu0 0.0
        %1359 = vmatprep.subr.mxu0 0.0
        %1360 = vmatpush1.msra.mxu0 0.0
        %1361 = vmatprep.subr.mxu0 0.0
        %1362 = vmatpush1.msra.mxu0 0.0
        %1363 = vmatprep.subr.mxu0 0.0
        %1364 = vmatpush1.msra.mxu0 0.0
        %1365 = vmatprep.subr.mxu0 0.0
        %1366 = vmatpush1.msra.mxu0 %v1333
        %1367 = vmatprep.subr.mxu0 0.0
        %1368 = vmatpush2.msra.mxu0 0.0
        %1369 = vmatprep.subr.mxu0 0.0
        %1370 = vmatpush2.msra.mxu0 0.0
        %1371 = vmatprep.subr.mxu0 0.0
        %1372 = vmatpush2.msra.mxu0 0.0
        %1373 = vmatprep.subr.mxu0 0.0
        %1374 = vmatpush2.msra.mxu0 0.0
        %1375 = vmatprep.subr.mxu0 0.0
        %1376 = vmatpush2.msra.mxu0 0.0
        %1377 = vmatprep.subr.mxu0 0.0
        %1378 = vmatpush2.msra.mxu0 0.0
        %1379 = vmatprep.subr.mxu0 0.0
        %1380 = vmatpush2.msra.mxu0 0.0
        %1381 = vmatprep.subr.mxu0 0.0
        %1382 = vmatpush2.msra.mxu0 0.0
        %1383 = vmatprep.subr.mxu0 0.0
        %1384 = vmatpush2.msra.mxu0 0.0
        %1385 = vmatprep.subr.mxu0 0.0
        %1386 = vmatpush2.msra.mxu0 0.0
        %1387 = vmatprep.subr.mxu0 0.0
        %1388 = vmatpush2.msra.mxu0 0.0
        %1389 = vmatprep.subr.mxu0 0.0
        %1390 = vmatpush2.msra.mxu0 0.0
        %1391 = vmatprep.subr.mxu0 0.0
        %1392 = vmatpush2.msra.mxu0 0.0
        %1393 = vmatprep.subr.mxu0 0.0
        %1394 = vmatpush2.msra.mxu0 0.0
        %1395 = vmatprep.subr.mxu0 0.0
        %1396 = vmatpush2.msra.mxu0 0.0
        %1397 = vmatprep.subr.mxu0 0.0
        %1398 = vmatpush2.msra.mxu0 0.0
        %1399 = vmatprep.mubr.f32.mxu0 0.0
        %1400 = vmatmul.mubr.f32.gmra.mxu0 %v1329
        %v1401 = vpop.f32.mrf.mxu0
        %v1402 = vadd.f32 %v1325, %v1401
        %v1403 = vpop.f32.mrf.mxu0
        %1404 = vdwg.mxu0
        %v1405 = vld [vmem:[%s10] sm:$0xff]
        %v1406 = vld [vmem:[%s10 + $0x8] sm:$0xff]
        %v1407 = vld [vmem:[%s10 + $0x10] sm:$0xff]
        %v1408 = vld [vmem:[%s10 + $0x18] sm:$0xff]
        %v1409 = vld [vmem:[%s10 + $0x20] sm:$0xff]
        %v1410 = vld [vmem:[%s10 + $0x28] sm:$0xff]
        %v1411 = vld [vmem:[%s10 + $0x30] sm:$0xff]
        %v1412 = vld [vmem:[%s10 + $0x38] sm:$0xff]
        %v1413 = vld [vmem:[%s11] sm:$0x1]
        %v1415 = vsel %vm1000, %v1315, 0
        %1417 = vmatprep.subr.mxu0 0.0
        %1418 = vmatpush1.msra.mxu0 0.0
        %1419 = vmatprep.subr.mxu0 0.0
        %1420 = vmatpush1.msra.mxu0 0.0
        %1421 = vmatprep.subr.mxu0 0.0
        %1422 = vmatpush1.msra.mxu0 0.0
        %1423 = vmatprep.subr.mxu0 0.0
        %1424 = vmatpush1.msra.mxu0 0.0
        %1425 = vmatprep.subr.mxu0 0.0
        %1426 = vmatpush1.msra.mxu0 0.0
        %1427 = vmatprep.subr.mxu0 0.0
        %1428 = vmatpush1.msra.mxu0 0.0
        %1429 = vmatprep.subr.mxu0 0.0
        %1430 = vmatpush1.msra.mxu0 0.0
        %1431 = vmatprep.subr.mxu0 0.0
        %1432 = vmatpush1.msra.mxu0 0.0
        %1433 = vmatprep.subr.mxu0 0.0
        %1434 = vmatpush1.msra.mxu0 %v1412
        %1435 = vmatprep.subr.mxu0 0.0
        %1436 = vmatpush1.msra.mxu0 %v1411
        %1437 = vmatprep.subr.mxu0 0.0
        %1438 = vmatpush1.msra.mxu0 %v1410
        %1439 = vmatprep.subr.mxu0 0.0
        %1440 = vmatpush1.msra.mxu0 %v1409
        %1441 = vmatprep.subr.mxu0 0.0
        %1442 = vmatpush1.msra.mxu0 %v1408
        %1443 = vmatprep.subr.mxu0 0.0
        %1444 = vmatpush1.msra.mxu0 %v1407
        %1445 = vmatprep.subr.mxu0 0.0
        %1446 = vmatpush1.msra.mxu0 %v1406
        %1447 = vmatprep.subr.mxu0 0.0
        %1448 = vmatpush1.msra.mxu0 %v1405
        %1449 = vmatprep.subr.mxu0 0.0
        %1450 = vmatpush2.msra.mxu0 0.0
        %1451 = vmatprep.subr.mxu0 0.0
        %1452 = vmatpush2.msra.mxu0 0.0
        %1453 = vmatprep.subr.mxu0 0.0
        %1454 = vmatpush2.msra.mxu0 0.0
        %1455 = vmatprep.subr.mxu0 0.0
        %1456 = vmatpush2.msra.mxu0 0.0
        %1457 = vmatprep.subr.mxu0 0.0
        %1458 = vmatpush2.msra.mxu0 0.0
        %1459 = vmatprep.subr.mxu0 0.0
        %1460 = vmatpush2.msra.mxu0 0.0
        %1461 = vmatprep.subr.mxu0 0.0
        %1462 = vmatpush2.msra.mxu0 0.0
        %1463 = vmatprep.subr.mxu0 0.0
        %1464 = vmatpush2.msra.mxu0 0.0
        %1465 = vmatprep.subr.mxu0 0.0
        %1466 = vmatpush2.msra.mxu0 0.0
        %1467 = vmatprep.subr.mxu0 0.0
        %1468 = vmatpush2.msra.mxu0 0.0
        %1469 = vmatprep.subr.mxu0 0.0
        %1470 = vmatpush2.msra.mxu0 0.0
        %1471 = vmatprep.subr.mxu0 0.0
        %1472 = vmatpush2.msra.mxu0 0.0
        %1473 = vmatprep.subr.mxu0 0.0
        %1474 = vmatpush2.msra.mxu0 0.0
        %1475 = vmatprep.subr.mxu0 0.0
        %1476 = vmatpush2.msra.mxu0 0.0
        %1477 = vmatprep.subr.mxu0 0.0
        %1478 = vmatpush2.msra.mxu0 0.0
        %1479 = vmatprep.subr.mxu0 0.0
        %1480 = vmatpush2.msra.mxu0 0.0
        %1481 = vmatprep.mubr.f32.mxu0 0.0
        %1482 = vmatmul.mubr.f32.gmra.mxu0 %v1415
        %v1483 = vpop.f32.mrf.mxu0
        %v1484 = vadd.f32 %v1413, %v1483
        %v1485 = vpop.f32.mrf.mxu0
        %1486 = vdwg.mxu0
        %v1487 = vadd.f32 %v1484, 1.0
        %v1488 = vlaneseq
        %v1489 = vshrl.u32 %v1488, 7
        %v1490 = vsub.s32 0, %v1489
        %v1491 = vrot.slane %v1487, %v1490
        %v1492 = vmul.f32 %v1402, %v1491
        %v1493 = vlaneseq
        %v1494 = vshrl.u32 %v1493, 7
        %v1495 = vsub.s32 0, %v1494
        %v1496 = vrot.slane %v1484, %v1495
        %1498 = vrot.lane.b32.xlu0 %v1496, 112
        %v1499 = vpop.permute.xlu0 %1498
        %v1501 = vadd.f32 %v1492, %v1499
        %v1502 = vld [vmem:[%s12] sm:$0xff]
        %v1503 = vld [vmem:[%s12 + $0x8] sm:$0xff]
        %v1504 = vld [vmem:[%s13] sm:$0x1]
        %v1506 = vlaneseq
        %v1507 = vshrl.u32 %v1506, 7
        %v1508 = vsub.s32 0, %v1507
        %v1509 = vrot.slane %v1504, %v1508
        %vm1511 = vcmask 130048
        %v1513 = vsel %vm1511, %v1501, 0
        %1515 = vmatprep.subr.mxu0 0.0
        %1516 = vmatpush1.msra.mxu0 0.0
        %1517 = vmatprep.subr.mxu0 0.0
        %1518 = vmatpush1.msra.mxu0 0.0
        %1519 = vmatprep.subr.mxu0 0.0
        %1520 = vmatpush1.msra.mxu0 0.0
        %1521 = vmatprep.subr.mxu0 0.0
        %1522 = vmatpush1.msra.mxu0 0.0
        %1523 = vmatprep.subr.mxu0 0.0
        %1524 = vmatpush1.msra.mxu0 0.0
        %1525 = vmatprep.subr.mxu0 0.0
        %1526 = vmatpush1.msra.mxu0 0.0
        %1527 = vmatprep.subr.mxu0 0.0
        %1528 = vmatpush1.msra.mxu0 0.0
        %1529 = vmatprep.subr.mxu0 0.0
        %1530 = vmatpush1.msra.mxu0 0.0
        %1531 = vmatprep.subr.mxu0 0.0
        %1532 = vmatpush1.msra.mxu0 0.0
        %1533 = vmatprep.subr.mxu0 0.0
        %1534 = vmatpush1.msra.mxu0 0.0
        %1535 = vmatprep.subr.mxu0 0.0
        %1536 = vmatpush1.msra.mxu0 0.0
        %1537 = vmatprep.subr.mxu0 0.0
        %1538 = vmatpush1.msra.mxu0 0.0
        %1539 = vmatprep.subr.mxu0 0.0
        %1540 = vmatpush1.msra.mxu0 0.0
        %1541 = vmatprep.subr.mxu0 0.0
        %1542 = vmatpush1.msra.mxu0 0.0
        %1543 = vmatprep.subr.mxu0 0.0
        %1544 = vmatpush1.msra.mxu0 %v1503
        %1545 = vmatprep.subr.mxu0 0.0
        %1546 = vmatpush1.msra.mxu0 %v1502
        %1547 = vmatprep.subr.mxu0 0.0
        %1548 = vmatpush2.msra.mxu0 0.0
        %1549 = vmatprep.subr.mxu0 0.0
        %1550 = vmatpush2.msra.mxu0 0.0
        %1551 = vmatprep.subr.mxu0 0.0
        %1552 = vmatpush2.msra.mxu0 0.0
        %1553 = vmatprep.subr.mxu0 0.0
        %1554 = vmatpush2.msra.mxu0 0.0
        %1555 = vmatprep.subr.mxu0 0.0
        %1556 = vmatpush2.msra.mxu0 0.0
        %1557 = vmatprep.subr.mxu0 0.0
        %1558 = vmatpush2.msra.mxu0 0.0
        %1559 = vmatprep.subr.mxu0 0.0
        %1560 = vmatpush2.msra.mxu0 0.0
        %1561 = vmatprep.subr.mxu0 0.0
        %1562 = vmatpush2.msra.mxu0 0.0
        %1563 = vmatprep.subr.mxu0 0.0
        %1564 = vmatpush2.msra.mxu0 0.0
        %1565 = vmatprep.subr.mxu0 0.0
        %1566 = vmatpush2.msra.mxu0 0.0
        %1567 = vmatprep.subr.mxu0 0.0
        %1568 = vmatpush2.msra.mxu0 0.0
        %1569 = vmatprep.subr.mxu0 0.0
        %1570 = vmatpush2.msra.mxu0 0.0
        %1571 = vmatprep.subr.mxu0 0.0
        %1572 = vmatpush2.msra.mxu0 0.0
        %1573 = vmatprep.subr.mxu0 0.0
        %1574 = vmatpush2.msra.mxu0 0.0
        %1575 = vmatprep.subr.mxu0 0.0
        %1576 = vmatpush2.msra.mxu0 0.0
        %1577 = vmatprep.subr.mxu0 0.0
        %1578 = vmatpush2.msra.mxu0 0.0
        %1579 = vmatprep.mubr.f32.mxu0 0.0
        %1580 = vmatmul.mubr.f32.gmra.mxu0 %v1513
        %v1581 = vpop.f32.mrf.mxu0
        %v1582 = vadd.f32 %v1509, %v1581
        %v1583 = vpop.f32.mrf.mxu0
        %1584 = vdwg.mxu0
        %v1585 = vmax.f32 %v1582, 0.0
        %v1586 = vld [vmem:[%s14] sm:$0xff]
        %v1587 = vld [vmem:[%s14 + $0x8] sm:$0xff]
        %v1588 = vld [vmem:[%s14 + $0x10] sm:$0xff]
        %v1589 = vld [vmem:[%s14 + $0x18] sm:$0xff]
        %v1590 = vld [vmem:[%s15] sm:$0x1]
        %v1592 = vlaneseq
        %v1593 = vshrl.u32 %v1592, 7
        %v1594 = vsub.s32 0, %v1593
        %v1595 = vrot.slane %v1590, %v1594
        %vm1597 = vcmask 261120
        %v1599 = vsel %vm1597, %v1585, 0
        %1601 = vmatprep.subr.mxu0 0.0
        %1602 = vmatpush1.msra.mxu0 0.0
        %1603 = vmatprep.subr.mxu0 0.0
        %1604 = vmatpush1.msra.mxu0 0.0
        %1605 = vmatprep.subr.mxu0 0.0
        %1606 = vmatpush1.msra.mxu0 0.0
        %1607 = vmatprep.subr.mxu0 0.0
        %1608 = vmatpush1.msra.mxu0 0.0
        %1609 = vmatprep.subr.mxu0 0.0
        %1610 = vmatpush1.msra.mxu0 0.0
        %1611 = vmatprep.subr.mxu0 0.0
        %1612 = vmatpush1.msra.mxu0 0.0
        %1613 = vmatprep.subr.mxu0 0.0
        %1614 = vmatpush1.msra.mxu0 0.0
        %1615 = vmatprep.subr.mxu0 0.0
        %1616 = vmatpush1.msra.mxu0 0.0
        %1617 = vmatprep.subr.mxu0 0.0
        %1618 = vmatpush1.msra.mxu0 0.0
        %1619 = vmatprep.subr.mxu0 0.0
        %1620 = vmatpush1.msra.mxu0 0.0
        %1621 = vmatprep.subr.mxu0 0.0
        %1622 = vmatpush1.msra.mxu0 0.0
        %1623 = vmatprep.subr.mxu0 0.0
        %1624 = vmatpush1.msra.mxu0 0.0
        %1625 = vmatprep.subr.mxu0 0.0
        %1626 = vmatpush1.msra.mxu0 %v1589
        %1627 = vmatprep.subr.mxu0 0.0
        %1628 = vmatpush1.msra.mxu0 %v1588
        %1629 = vmatprep.subr.mxu0 0.0
        %1630 = vmatpush1.msra.mxu0 %v1587
        %1631 = vmatprep.subr.mxu0 0.0
        %1632 = vmatpush1.msra.mxu0 %v1586
        %1633 = vmatprep.subr.mxu0 0.0
        %1634 = vmatpush2.msra.mxu0 0.0
        %1635 = vmatprep.subr.mxu0 0.0
        %1636 = vmatpush2.msra.mxu0 0.0
        %1637 = vmatprep.subr.mxu0 0.0
        %1638 = vmatpush2.msra.mxu0 0.0
        %1639 = vmatprep.subr.mxu0 0.0
        %1640 = vmatpush2.msra.mxu0 0.0
        %1641 = vmatprep.subr.mxu0 0.0
        %1642 = vmatpush2.msra.mxu0 0.0
        %1643 = vmatprep.subr.mxu0 0.0
        %1644 = vmatpush2.msra.mxu0 0.0
        %1645 = vmatprep.subr.mxu0 0.0
        %1646 = vmatpush2.msra.mxu0 0.0
        %1647 = vmatprep.subr.mxu0 0.0
        %1648 = vmatpush2.msra.mxu0 0.0
        %1649 = vmatprep.subr.mxu0 0.0
        %1650 = vmatpush2.msra.mxu0 0.0
        %1651 = vmatprep.subr.mxu0 0.0
        %1652 = vmatpush2.msra.mxu0 0.0
        %1653 = vmatprep.subr.mxu0 0.0
        %1654 = vmatpush2.msra.mxu0 0.0
        %1655 = vmatprep.subr.mxu0 0.0
        %1656 = vmatpush2.msra.mxu0 0.0
        %1657 = vmatprep.subr.mxu0 0.0
        %1658 = vmatpush2.msra.mxu0 0.0
        %1659 = vmatprep.subr.mxu0 0.0
        %1660 = vmatpush2.msra.mxu0 0.0
        %1661 = vmatprep.subr.mxu0 0.0
        %1662 = vmatpush2.msra.mxu0 0.0
        %1663 = vmatprep.subr.mxu0 0.0
        %1664 = vmatpush2.msra.mxu0 0.0
        %1665 = vmatprep.mubr.f32.mxu0 0.0
        %1666 = vmatmul.mubr.f32.gmra.mxu0 %v1599
        %v1667 = vpop.f32.mrf.mxu0
        %v1668 = vadd.f32 %v1595, %v1667
        %v1669 = vpop.f32.mrf.mxu0
        %1670 = vdwg.mxu0
        %v1671 = vadd.f32 %v1402, %v1668
        %v1672 = vld [vmem:[%s16] sm:$0xff]
        %v1673 = vld [vmem:[%s16 + $0x8] sm:$0xff]
        %v1674 = vld [vmem:[%s17] sm:$0x1]
        %v1676 = vlaneseq
        %v1677 = vshrl.u32 %v1676, 7
        %v1678 = vsub.s32 0, %v1677
        %v1679 = vrot.slane %v1674, %v1678
        %v1682 = vsel %vm1511, %v1671, 0
        %1684 = vmatprep.subr.mxu0 0.0
        %1685 = vmatpush1.msra.mxu0 0.0
        %1686 = vmatprep.subr.mxu0 0.0
        %1687 = vmatpush1.msra.mxu0 0.0
        %1688 = vmatprep.subr.mxu0 0.0
        %1689 = vmatpush1.msra.mxu0 0.0
        %1690 = vmatprep.subr.mxu0 0.0
        %1691 = vmatpush1.msra.mxu0 0.0
        %1692 = vmatprep.subr.mxu0 0.0
        %1693 = vmatpush1.msra.mxu0 0.0
        %1694 = vmatprep.subr.mxu0 0.0
        %1695 = vmatpush1.msra.mxu0 0.0
        %1696 = vmatprep.subr.mxu0 0.0
        %1697 = vmatpush1.msra.mxu0 0.0
        %1698 = vmatprep.subr.mxu0 0.0
        %1699 = vmatpush1.msra.mxu0 0.0
        %1700 = vmatprep.subr.mxu0 0.0
        %1701 = vmatpush1.msra.mxu0 0.0
        %1702 = vmatprep.subr.mxu0 0.0
        %1703 = vmatpush1.msra.mxu0 0.0
        %1704 = vmatprep.subr.mxu0 0.0
        %1705 = vmatpush1.msra.mxu0 0.0
        %1706 = vmatprep.subr.mxu0 0.0
        %1707 = vmatpush1.msra.mxu0 0.0
        %1708 = vmatprep.subr.mxu0 0.0
        %1709 = vmatpush1.msra.mxu0 0.0
        %1710 = vmatprep.subr.mxu0 0.0
        %1711 = vmatpush1.msra.mxu0 0.0
        %1712 = vmatprep.subr.mxu0 0.0
        %1713 = vmatpush1.msra.mxu0 %v1673
        %1714 = vmatprep.subr.mxu0 0.0
        %1715 = vmatpush1.msra.mxu0 %v1672
        %1716 = vmatprep.subr.mxu0 0.0
        %1717 = vmatpush2.msra.mxu0 0.0
        %1718 = vmatprep.subr.mxu0 0.0
        %1719 = vmatpush2.msra.mxu0 0.0
        %1720 = vmatprep.subr.mxu0 0.0
        %1721 = vmatpush2.msra.mxu0 0.0
        %1722 = vmatprep.subr.mxu0 0.0
        %1723 = vmatpush2.msra.mxu0 0.0
        %1724 = vmatprep.subr.mxu0 0.0
        %1725 = vmatpush2.msra.mxu0 0.0
        %1726 = vmatprep.subr.mxu0 0.0
        %1727 = vmatpush2.msra.mxu0 0.0
        %1728 = vmatprep.subr.mxu0 0.0
        %1729 = vmatpush2.msra.mxu0 0.0
        %1730 = vmatprep.subr.mxu0 0.0
        %1731 = vmatpush2.msra.mxu0 0.0
        %1732 = vmatprep.subr.mxu0 0.0
        %1733 = vmatpush2.msra.mxu0 0.0
        %1734 = vmatprep.subr.mxu0 0.0
        %1735 = vmatpush2.msra.mxu0 0.0
        %1736 = vmatprep.subr.mxu0 0.0
        %1737 = vmatpush2.msra.mxu0 0.0
        %1738 = vmatprep.subr.mxu0 0.0
        %1739 = vmatpush2.msra.mxu0 0.0
        %1740 = vmatprep.subr.mxu0 0.0
        %1741 = vmatpush2.msra.mxu0 0.0
        %1742 = vmatprep.subr.mxu0 0.0
        %1743 = vmatpush2.msra.mxu0 0.0
        %1744 = vmatprep.subr.mxu0 0.0
        %1745 = vmatpush2.msra.mxu0 0.0
        %1746 = vmatprep.subr.mxu0 0.0
        %1747 = vmatpush2.msra.mxu0 0.0
        %1748 = vmatprep.mubr.f32.mxu0 0.0
        %1749 = vmatmul.mubr.f32.gmra.mxu0 %v1682
        %v1750 = vpop.f32.mrf.mxu0
        %v1751 = vadd.f32 %v1679, %v1750
        %v1752 = vpop.f32.mrf.mxu0
        %1753 = vdwg.mxu0
        %vm1754 = vcmask 25600
        %1755 = vst.msk [vmem:[%s612] sm:$0x3] %vm1754, %v1751
        %v1756 = vlaneseq
        %v1757 = vshrl.u32 %v1756, 7
        %v1758 = vsub.s32 0, %v1757
        %v1759 = vrot.slane %v1315, %v1758
        %vm1760 = vcmask 517120
        %1761 = vst.msk [vmem:[%s619] sm:$0x3] %vm1760, %v1759
        %s1762 = sand.u32 %s433, 1
        %s1763 = scalar_lea.sflag [#allocation3], %s1762
        %s1764 = sand.u32 %s433, 1
        %s1765 = smul.addr %s1764, 2
        %s1766 = scalar_lea.vmem [#allocation2], %s1765
        %s1767 = sand.u32 %s459, 1
        %s1768 = scalar_lea.sflag [#allocation5], %s1767
        %s1769 = sand.u32 %s459, 1
        %s1770 = smul.addr %s1769, 2
        %s1771 = scalar_lea.vmem [#allocation4], %s1770
        // Predicated region
        $region93: #{pc_conditioned_grasp_encoder_forward.1} parent=91 // pred_check
          %p1772 = pneg %p443
        $region94: #{pc_conditioned_grasp_encoder_forward.1} parent=91 // pred_check_branch
          %1774 = sbr.rel (%p1772) target = $region96
        $region95: #{pc_conditioned_grasp_encoder_forward.1} parent=91 // pred_region
          %s1776 = ssub.s32 32, 32
          %1777 = vsyncadd %s1763, %s1776
          %s1778 = smul.addr %s37, 32
          %s1779 = scalar_lea.hbm %s18, %s1778
          %s1781 = sshll.u32 %s1766, 4
          %s1782 = int_to_ptr.vmem [resolvable:$true] %s1781
          %1784 = dma.vmem_to_hbm [thread:$0]  %s1782, 32, %s1779, %s1763
        $region96: #{pc_conditioned_grasp_encoder_forward.1} parent=91 // pred_fallthru
          _
        // Predicated region
        $region97: #{pc_conditioned_grasp_encoder_forward.1} parent=91 // pred_check
          %p1785 = pneg %p469
        $region98: #{pc_conditioned_grasp_encoder_forward.1} parent=91 // pred_check_branch
          %1787 = sbr.rel (%p1785) target = $region100
        $region99: #{pc_conditioned_grasp_encoder_forward.1} parent=91 // pred_region
          %s1789 = ssub.s32 32, 32
          %1790 = vsyncadd %s1768, %s1789
          %s1791 = smul.addr %s37, 32
          %s1792 = scalar_lea.hbm %s19, %s1791
          %s1794 = sshll.u32 %s1771, 4
          %s1795 = int_to_ptr.vmem [resolvable:$true] %s1794
          %1797 = dma.vmem_to_hbm [thread:$0]  %s1795, 32, %s1792, %s1768
        $region100: #{pc_conditioned_grasp_encoder_forward.1} parent=91 // pred_fallthru
          _
      $region92: #{pc_conditioned_grasp_encoder_forward.1} parent=5 // pred_fallthru
        _
      %p1798 = scmp.le.s32.totalorder 2, %s32
      // Predicated region
      $region101: #{pc_conditioned_grasp_encoder_forward.1} parent=5 // pred_check
        %p1799 = pneg %p1798
      $region102: #{pc_conditioned_grasp_encoder_forward.1} parent=5 // pred_check_branch
        %1801 = sbr.rel (%p1799) target = $region104
      $region103: #{pc_conditioned_grasp_encoder_forward.1} parent=5 // pred_region
        %s1802 = ssub.s32 %s32, 2
        // Predicated region
        $region105: #{pc_conditioned_grasp_encoder_forward.1} parent=103 // pred_check
          %p1803 = pneg %p449
        $region106: #{pc_conditioned_grasp_encoder_forward.1} parent=103 // pred_check_branch
          %1805 = sbr.rel (%p1803) target = $region108
        $region107: #{pc_conditioned_grasp_encoder_forward.1} parent=103 // pred_region
          %s1806 = sand.u32 %s434, 1
          %s1807 = scalar_lea.sflag [#allocation3], %s1806
          %s1808 = sand.u32 %s434, 1
          %s1809 = smul.addr %s1808, 2
          %s1810 = scalar_lea.vmem [#allocation2], %s1809
          %1811 = dma.done %s1807, 32
        $region108: #{pc_conditioned_grasp_encoder_forward.1} parent=103 // pred_fallthru
          _
        // Predicated region
        $region109: #{pc_conditioned_grasp_encoder_forward.1} parent=103 // pred_check
          %p1812 = pneg %p475
        $region110: #{pc_conditioned_grasp_encoder_forward.1} parent=103 // pred_check_branch
          %1814 = sbr.rel (%p1812) target = $region112
        $region111: #{pc_conditioned_grasp_encoder_forward.1} parent=103 // pred_region
          %s1815 = sand.u32 %s460, 1
          %s1816 = scalar_lea.sflag [#allocation5], %s1815
          %s1817 = sand.u32 %s460, 1
          %s1818 = smul.addr %s1817, 2
          %s1819 = scalar_lea.vmem [#allocation4], %s1818
          %1820 = dma.done %s1816, 32
        $region112: #{pc_conditioned_grasp_encoder_forward.1} parent=103 // pred_fallthru
          _
      $region104: #{pc_conditioned_grasp_encoder_forward.1} parent=5 // pred_fallthru
        _
    $region6: #{pc_conditioned_grasp_encoder_forward.1} parent=1 // loop_footer
      %s36 = sadd.s32 1, %s32
    $region7: #{pc_conditioned_grasp_encoder_forward.1} parent=1 // loop_footer_branch
      %31 = sbr.rel target = $region3
    $region8: #{pc_conditioned_grasp_encoder_forward.1} parent=1 // loop_exit
      _
    %1821 = vsyncpa [#allocation3], 1
    %s1822 = scalar_lea.sflag [#allocation3], 1
    %1823 = vsyncpa %s1822, 1
    %1824 = vsyncpa [#allocation5], 1
    %s1825 = scalar_lea.sflag [#allocation5], 1
    %1826 = vsyncpa %s1825, 1

</llo_original>
